<compile_context>
chip_gen: v6e
topology: v6e:2x2x1
jax: 0.10.0
libtpu: 0.0.40
codegen_flags: <defaults>
</compile_context>

<pallas_src>
import functools

import numpy as np
import jax
import jax.numpy as jnp
from jax.experimental import pallas as pl
from jax.experimental.pallas import tpu as pltpu

_LANES = 128
_EPS = 1e-5


# ------------------------- the fused kernel -------------------------

def _resnet_kernel(x_ref, w_ref, aux_ref, o_ref, pbA, pbB,
                   *, n, h, ho, bias_base):
    f32 = jnp.float32
    cin_lanes = x_ref.shape[-1]            # w * cin (64 for the stem input)
    rows_a = pbA.shape[1]                  # h + 4 (halo + pad-to-8 rows)
    m1 = n * h                             # full-res rows   (32)
    m2 = n * ho                            # half-res rows   (16)

    # Zero both scratch buffers once (~30 KB): halo rows / unused lanes implement
    # the vertical conv zero padding and the cin 4->8 pad; interiors are fully
    # overwritten before every read.  (Cheaper than per-region halo zeroing to
    # express; the cost is negligible at this size.)
    pbA[...] = jnp.zeros(pbA.shape, f32)
    pbB[...] = jnp.zeros(pbB.shape, f32)

    # Stem input (n, h, w*cin) into lanes [0, cin_lanes) of the padded interior.
    pbA[:, 1:1 + h, 0:cin_lanes] = x_ref[...]

    def bias(i):                           # (1, 128) broadcast row, BN scale already folded
        return aux_ref[bias_base + i:bias_base + i + 1, :]

    def conv_s1_full(base):
        """3x3 / stride-1 / pad-1 conv over pbA as 3 banded (128,128) matmuls."""
        acc = None
        for ki in range(3):
            win = pbA[:, ki:ki + h, :].reshape(m1, _LANES)
            d = jnp.dot(win, w_ref[base + ki], preferred_element_type=f32)
            acc = d if acc is None else acc + d
        return acc

    # ---- stem: conv3x3(4->8) + BN + ReLU ----
    x1 = jnp.maximum(conv_s1_full(0) + bias(0), 0.0)          # (32, 128)
    pbA[:, 1:1 + h, :] = x1.reshape(n, h, _LANES)

    # ---- BasicBlock 1: 8 -> 8, identity shortcut ----
    y = jnp.maximum(conv_s1_full(3) + bias(1), 0.0)
    pbA[:, 1:1 + h, :] = y.reshape(n, h, _LANES)
    x2 = jnp.maximum(conv_s1_full(6) + bias(2) + x1, 0.0)      # residual = x1
    pbA[:, 1:1 + h, :] = x2.reshape(n, h, _LANES)

    # ---- BasicBlock 2: 8 -> 16, stride 2, 1x1+BN projection shortcut ----
    # Vertical stride-2 gather: one tiny selection matmul with a precomputed 0/1
    # matrix (rows ordered [V0; V1; V2] = padded rows {2r, 2r+1, 2r+2}).
    # Horizontal stride-2 is baked into the banded weights below.
    sel = aux_ref[0:3 * m2, 0:n * rows_a]                      # (48, 40)
    sub = jnp.dot(sel, pbA[...].reshape(n * rows_a, _LANES),
                  preferred_element_type=f32)                  # (48, 128)
    v0, v1, v2 = sub[0:m2], sub[m2:2 * m2], sub[2 * m2:3 * m2]

    identity = jnp.dot(v1, w_ref[9], preferred_element_type=f32) + bias(3)
    y2 = (jnp.dot(v0, w_ref[10], preferred_element_type=f32)
          + jnp.dot(v1, w_ref[11], preferred_element_type=f32)
          + jnp.dot(v2, w_ref[12], preferred_element_type=f32)
          + bias(4))
    y2 = jnp.maximum(y2, 0.0)                                  # (16, 128)
    pbB[:, 1:1 + ho, :] = y2.reshape(n, ho, _LANES)

    acc = None
    for ki in range(3):
        win = pbB[:, ki:ki + ho, :].reshape(m2, _LANES)
        d = jnp.dot(win, w_ref[13 + ki], preferred_element_type=f32)
        acc = d if acc is None else acc + d
    out = jnp.maximum(acc + bias(5) + identity, 0.0)

    o_ref[...] = out                                           # (n*ho, wo*16) lane-dense


# ------------------------- one-time parameter repack -------------------------

def _banded_weights(p, *, w_in, w_out, stride, pad, eps=_EPS):
    """Per-vertical-tap banded matrices (kh, 128, 128) + bias row (128,).

    W_ki[jin*cin + ci, jout*cout + co] = (BN-folded w)[co, ci, ki, jin - stride*jout + pad]
    for in-range horizontal taps, zero otherwise (implements horizontal zero-pad
    and horizontal stride).  BN scale is folded into the weights; only the bias
    survives to the kernel.
    """
    w, gamma, beta, mean, var = (np.asarray(a, np.float32) for a in p)
    cout, cin, kh, kw = w.shape
    scale = gamma / np.sqrt(var + eps)
    ws = w * scale[:, None, None, None]
    bias_c = beta - mean * scale
    assert w_in * cin <= _LANES and w_out * cout == _LANES
    mats = np.zeros((kh, _LANES, _LANES), np.float32)
    for ki in range(kh):
        for jout in range(w_out):
            for kj in range(kw):
                jin = stride * jout + kj - pad
                if 0 <= jin < w_in:
                    mats[ki,
                         jin * cin:(jin + 1) * cin,
                         jout * cout:(jout + 1) * cout] = ws[:, :, ki, kj].T
    bias = np.tile(bias_c, w_out).astype(np.float32)           # (128,)
    return mats, bias


def prepare_params(params, *, n, h, w):
    """Repack PyTorch-layout conv/BN params into the kernel's two flat blobs."""
    ho, wo = h // 2, w // 2
    assert h % 2 == 0 and w % 2 == 0
    assert w * 8 == _LANES and wo * 16 == _LANES, "fixed config requires 16x16 input maps"

    specs = [
        ("stem",     dict(w_in=w,  w_out=w,  stride=1, pad=1)),
        ("b1_conv1", dict(w_in=w,  w_out=w,  stride=1, pad=1)),
        ("b1_conv2", dict(w_in=w,  w_out=w,  stride=1, pad=1)),
        ("b2_down",  dict(w_in=w,  w_out=wo, stride=2, pad=0)),
        ("b2_conv1", dict(w_in=w,  w_out=wo, stride=2, pad=1)),
        ("b2_conv2", dict(w_in=wo, w_out=wo, stride=1, pad=1)),
    ]
    mats, biases = [], []
    for name, cfg in specs:
        m, bvec = _banded_weights(params[name], **cfg)
        mats.append(m)
        biases.append(bvec)
    wblob = np.concatenate(mats, axis=0)                        # (16, 128, 128)

    # Row-selection matrix for block 2's vertical stride-2 gather.
    rows_a = h + 4                                              # halo rows + pad to x8
    sel = np.zeros((3 * n * ho, n * rows_a), np.float32)
    for ki in range(3):
        for b in range(n):
            for r in range(ho):
                sel[ki * n * ho + b * ho + r, b * rows_a + 2 * r + ki] = 1.0

    bias_base = ((3 * n * ho + 7) // 8) * 8
    aux_rows = ((bias_base + 6 + 7) // 8) * 8
    aux = np.zeros((aux_rows, _LANES), np.float32)
    aux[:3 * n * ho, :n * rows_a] = sel
    aux[bias_base:bias_base + 6, :] = np.stack(biases, axis=0)
    return jnp.asarray(wblob), jnp.asarray(aux)


# ------------------------- JAX wrapper -------------------------

@jax.jit
def resnet_forward(x_nchw, wblob, aux):
    n, cin, h, w = x_nchw.shape
    ho, wo = h // 2, w // 2
    assert w * 8 == _LANES and wo * 16 == _LANES and w * cin <= _LANES and h % 2 == 0

    # TODO(synk): NCHW->NHWC relayout left to XLA (tiny input); see header note.
    x = jnp.transpose(x_nchw, (0, 2, 3, 1)).reshape(n, h, w * cin)

    kernel = functools.partial(_resnet_kernel, n=n, h=h, ho=ho,
                               bias_base=((3 * n * ho + 7) // 8) * 8)
    out = pl.pallas_call(
        kernel,
        out_shape=jax.ShapeDtypeStruct((n * ho, wo * 16), jnp.float32),
        scratch_shapes=[
            pltpu.VMEM((n, h + 4, _LANES), jnp.float32),    # full-res stage (16x16x8)
            pltpu.VMEM((n, ho + 2, _LANES), jnp.float32),   # half-res stage (8x8x16)
        ],
    )(x, wblob, aux)
    return jnp.transpose(out.reshape(n, ho, wo, 16), (0, 3, 1, 2))   # -> NCHW


# ------------------------- pure-JAX reference -------------------------

def ref_conv_bn(x, params, stride, relu=True, residual=None, eps=_EPS):
    w, gamma, beta, mean, var = params
    kh, kw = w.shape[2], w.shape[3]
    out = jax.lax.conv_general_dilated(
        x, jnp.transpose(w, (2, 3, 1, 0)),
        window_strides=(stride, stride),
        padding=[(kh // 2, kh // 2), (kw // 2, kw // 2)],
        dimension_numbers=("NHWC", "HWIO", "NHWC"))
    scale = gamma / jnp.sqrt(var + eps)
    out = out * scale + (beta - mean * scale)
    if residual is not None:
        out = out + residual
    if relu:
        out = jnp.maximum(out, 0.0)
    return out


def ref_forward(x_nchw, params):
    x = jnp.transpose(x_nchw, (0, 2, 3, 1))
    x = ref_conv_bn(x, params["stem"], 1, True)
    y = ref_conv_bn(x, params["b1_conv1"], 1, True)
    x = ref_conv_bn(y, params["b1_conv2"], 1, True, residual=x)
    identity = ref_conv_bn(x, params["b2_down"], 2, False)
    y = ref_conv_bn(x, params["b2_conv1"], 2, True)
    x = ref_conv_bn(y, params["b2_conv2"], 1, True, residual=identity)
    return jnp.transpose(x, (0, 3, 1, 2))


# ------------------------- parameter init -------------------------

def init_conv_bn(key, cout, cin, k):
    kw_, kg, kb = jax.random.split(key, 3)
    w = jax.random.normal(kw_, (cout, cin, k, k), jnp.float32) * (1.0 / (k * k * cin) ** 0.5)
    gamma = 1.0 + 0.1 * jax.random.normal(kg, (cout,), jnp.float32)
    beta = 0.1 * jax.random.normal(kb, (cout,), jnp.float32)
    mean = jnp.zeros((cout,), jnp.float32)
    var = jnp.ones((cout,), jnp.float32)
    return (w, gamma, beta, mean, var)


def init_params(key):
    ks = jax.random.split(key, 6)
    return {
        "stem":     init_conv_bn(ks[0], 8, 4, 3),
        "b1_conv1": init_conv_bn(ks[1], 8, 8, 3),
        "b1_conv2": init_conv_bn(ks[2], 8, 8, 3),
        "b2_down":  init_conv_bn(ks[3], 16, 8, 1),
        "b2_conv1": init_conv_bn(ks[4], 16, 8, 3),
        "b2_conv2": init_conv_bn(ks[5], 16, 16, 3),
    }


# ------------------------- main -------------------------

if __name__ == "__main__":
    key = jax.random.PRNGKey(0)
    kx, kp = jax.random.split(key)
    x = jax.random.normal(kx, (2, 4, 16, 16), jnp.float32)     # NCHW, like PyTorch
    params = init_params(kp)

    # One-time repack of weights into the kernel's banded/flat layout.
    wblob, aux = prepare_params(params, n=2, h=16, w=16)

    out = jax.block_until_ready(resnet_forward(x, wblob, aux))
    ref = jax.block_until_ready(ref_forward(x, params))

    assert out.shape == (2, 16, 8, 8), out.shape
    err = float(jnp.max(jnp.abs(out - ref)))
    assert jnp.allclose(out, ref, atol=1e-3, rtol=1e-3), err
    print("KERNEL_OK")
</pallas_src>

<mosaic_0001>
module attributes {stable_mosaic.version = 11 : i64} {
  func.func @_resnet_kernel(%arg0: memref<2x16x64xf32, #tpu.memory_space<vmem>>, %arg1: memref<16x128x128xf32, #tpu.memory_space<vmem>>, %arg2: memref<56x128xf32, #tpu.memory_space<vmem>>, %arg3: memref<16x128xf32, #tpu.memory_space<vmem>>, %arg4: memref<2x20x128xf32, #tpu.memory_space<vmem>>, %arg5: memref<2x10x128xf32, #tpu.memory_space<vmem>>) attributes {dimension_semantics = [], scalar_prefetch = 0 : i64, scratch_operands = 2 : i64, tpu.core_type = #tpu.core_type<tc>} {
    %cst = arith.constant 0.000000e+00 : f32
    %0 = vector.broadcast %cst : f32 to vector<2x20x128xf32>
    %c0 = arith.constant 0 : index
    %c0_0 = arith.constant 0 : index
    %c0_1 = arith.constant 0 : index
    %1 = vector.load %arg4[%c0, %c0_0, %c0_1] : memref<2x20x128xf32, #tpu.memory_space<vmem>>, vector<2x20x128xf32>
    tpu.vector_store %arg4[%c0, %c0_0, %c0_1], %0 {strides = array<i32>} : memref<2x20x128xf32, #tpu.memory_space<vmem>>, vector<2x20x128xf32>,
    %cst_2 = arith.constant 0.000000e+00 : f32
    %2 = vector.broadcast %cst_2 : f32 to vector<2x10x128xf32>
    %c0_3 = arith.constant 0 : index
    %c0_4 = arith.constant 0 : index
    %c0_5 = arith.constant 0 : index
    %3 = vector.load %arg5[%c0_3, %c0_4, %c0_5] : memref<2x10x128xf32, #tpu.memory_space<vmem>>, vector<2x10x128xf32>
    tpu.vector_store %arg5[%c0_3, %c0_4, %c0_5], %2 {strides = array<i32>} : memref<2x10x128xf32, #tpu.memory_space<vmem>>, vector<2x10x128xf32>,
    %c0_6 = arith.constant 0 : index
    %c0_7 = arith.constant 0 : index
    %c0_8 = arith.constant 0 : index
    %4 = vector.load %arg0[%c0_6, %c0_7, %c0_8] : memref<2x16x64xf32, #tpu.memory_space<vmem>>, vector<2x16x64xf32>
    %c0_9 = arith.constant 0 : index
    %c1 = arith.constant 1 : index
    %c0_10 = arith.constant 0 : index
    %5 = vector.load %arg4[%c0_9, %c1, %c0_10] : memref<2x20x128xf32, #tpu.memory_space<vmem>>, vector<2x16x64xf32>
    tpu.vector_store %arg4[%c0_9, %c1, %c0_10], %4 {strides = array<i32>} : memref<2x20x128xf32, #tpu.memory_space<vmem>>, vector<2x16x64xf32>,
    %c0_11 = arith.constant 0 : index
    %c0_12 = arith.constant 0 : index
    %c0_13 = arith.constant 0 : index
    %6 = vector.load %arg4[%c0_11, %c0_12, %c0_13] : memref<2x20x128xf32, #tpu.memory_space<vmem>>, vector<2x16x128xf32>
    %7 = vector.shape_cast %6 : vector<2x16x128xf32> to vector<32x128xf32>
    %c0_14 = arith.constant 0 : index
    %c0_15 = arith.constant 0 : index
    %c0_16 = arith.constant 0 : index
    %8 = vector.load %arg1[%c0_14, %c0_15, %c0_16] : memref<16x128x128xf32, #tpu.memory_space<vmem>>, vector<1x128x128xf32>
    %9 = vector.shape_cast %8 : vector<1x128x128xf32> to vector<128x128xf32>
    %cst_17 = arith.constant dense<0.000000e+00> : vector<32x128xf32>
    %10 = tpu.matmul %7, %9, %cst_17 {dimension_numbers = #tpu.dot_dimension_numbers<[1], [0], [0], [1], [0, 0, 1, 1], [], []>} : vector<32x128xf32>, vector<128x128xf32>, vector<32x128xf32> -> vector<32x128xf32>
    %c0_18 = arith.constant 0 : index
    %c1_19 = arith.constant 1 : index
    %c0_20 = arith.constant 0 : index
    %11 = vector.load %arg4[%c0_18, %c1_19, %c0_20] : memref<2x20x128xf32, #tpu.memory_space<vmem>>, vector<2x16x128xf32>
    %12 = vector.shape_cast %11 : vector<2x16x128xf32> to vector<32x128xf32>
    %c1_21 = arith.constant 1 : index
    %c0_22 = arith.constant 0 : index
    %c0_23 = arith.constant 0 : index
    %13 = vector.load %arg1[%c1_21, %c0_22, %c0_23] : memref<16x128x128xf32, #tpu.memory_space<vmem>>, vector<1x128x128xf32>
    %14 = vector.shape_cast %13 : vector<1x128x128xf32> to vector<128x128xf32>
    %cst_24 = arith.constant dense<0.000000e+00> : vector<32x128xf32>
    %15 = tpu.matmul %12, %14, %cst_24 {dimension_numbers = #tpu.dot_dimension_numbers<[1], [0], [0], [1], [0, 0, 1, 1], [], []>} : vector<32x128xf32>, vector<128x128xf32>, vector<32x128xf32> -> vector<32x128xf32>
    %16 = arith.addf %10, %15 : vector<32x128xf32>
    %c0_25 = arith.constant 0 : index
    %c2 = arith.constant 2 : index
    %c0_26 = arith.constant 0 : index
    %17 = vector.load %arg4[%c0_25, %c2, %c0_26] : memref<2x20x128xf32, #tpu.memory_space<vmem>>, vector<2x16x128xf32>
    %18 = vector.shape_cast %17 : vector<2x16x128xf32> to vector<32x128xf32>
    %c2_27 = arith.constant 2 : index
    %c0_28 = arith.constant 0 : index
    %c0_29 = arith.constant 0 : index
    %19 = vector.load %arg1[%c2_27, %c0_28, %c0_29] : memref<16x128x128xf32, #tpu.memory_space<vmem>>, vector<1x128x128xf32>
    %20 = vector.shape_cast %19 : vector<1x128x128xf32> to vector<128x128xf32>
    %cst_30 = arith.constant dense<0.000000e+00> : vector<32x128xf32>
    %21 = tpu.matmul %18, %20, %cst_30 {dimension_numbers = #tpu.dot_dimension_numbers<[1], [0], [0], [1], [0, 0, 1, 1], [], []>} : vector<32x128xf32>, vector<128x128xf32>, vector<32x128xf32> -> vector<32x128xf32>
    %22 = arith.addf %16, %21 : vector<32x128xf32>
    %c48 = arith.constant 48 : index
    %c0_31 = arith.constant 0 : index
    %23 = vector.load %arg2[%c48, %c0_31] : memref<56x128xf32, #tpu.memory_space<vmem>>, vector<1x128xf32>
    %24 = vector.broadcast %23 : vector<1x128xf32> to vector<32x128xf32>
    %25 = arith.addf %22, %24 : vector<32x128xf32>
    %cst_32 = arith.constant 0.000000e+00 : f32
    %26 = vector.broadcast %cst_32 : f32 to vector<32x128xf32>
    %27 = arith.maximumf %25, %26 : vector<32x128xf32>
    %28 = vector.shape_cast %27 : vector<32x128xf32> to vector<2x16x128xf32>
    %c0_33 = arith.constant 0 : index
    %c1_34 = arith.constant 1 : index
    %c0_35 = arith.constant 0 : index
    %29 = vector.load %arg4[%c0_33, %c1_34, %c0_35] : memref<2x20x128xf32, #tpu.memory_space<vmem>>, vector<2x16x128xf32>
    tpu.vector_store %arg4[%c0_33, %c1_34, %c0_35], %28 {strides = array<i32>} : memref<2x20x128xf32, #tpu.memory_space<vmem>>, vector<2x16x128xf32>,
    %c0_36 = arith.constant 0 : index
    %c0_37 = arith.constant 0 : index
    %c0_38 = arith.constant 0 : index
    %30 = vector.load %arg4[%c0_36, %c0_37, %c0_38] : memref<2x20x128xf32, #tpu.memory_space<vmem>>, vector<2x16x128xf32>
    %31 = vector.shape_cast %30 : vector<2x16x128xf32> to vector<32x128xf32>
    %c3 = arith.constant 3 : index
    %c0_39 = arith.constant 0 : index
    %c0_40 = arith.constant 0 : index
    %32 = vector.load %arg1[%c3, %c0_39, %c0_40] : memref<16x128x128xf32, #tpu.memory_space<vmem>>, vector<1x128x128xf32>
    %33 = vector.shape_cast %32 : vector<1x128x128xf32> to vector<128x128xf32>
    %cst_41 = arith.constant dense<0.000000e+00> : vector<32x128xf32>
    %34 = tpu.matmul %31, %33, %cst_41 {dimension_numbers = #tpu.dot_dimension_numbers<[1], [0], [0], [1], [0, 0, 1, 1], [], []>} : vector<32x128xf32>, vector<128x128xf32>, vector<32x128xf32> -> vector<32x128xf32>
    %c0_42 = arith.constant 0 : index
    %c1_43 = arith.constant 1 : index
    %c0_44 = arith.constant 0 : index
    %35 = vector.load %arg4[%c0_42, %c1_43, %c0_44] : memref<2x20x128xf32, #tpu.memory_space<vmem>>, vector<2x16x128xf32>
    %36 = vector.shape_cast %35 : vector<2x16x128xf32> to vector<32x128xf32>
    %c4 = arith.constant 4 : index
    %c0_45 = arith.constant 0 : index
    %c0_46 = arith.constant 0 : index
    %37 = vector.load %arg1[%c4, %c0_45, %c0_46] : memref<16x128x128xf32, #tpu.memory_space<vmem>>, vector<1x128x128xf32>
    %38 = vector.shape_cast %37 : vector<1x128x128xf32> to vector<128x128xf32>
    %cst_47 = arith.constant dense<0.000000e+00> : vector<32x128xf32>
    %39 = tpu.matmul %36, %38, %cst_47 {dimension_numbers = #tpu.dot_dimension_numbers<[1], [0], [0], [1], [0, 0, 1, 1], [], []>} : vector<32x128xf32>, vector<128x128xf32>, vector<32x128xf32> -> vector<32x128xf32>
    %40 = arith.addf %34, %39 : vector<32x128xf32>
    %c0_48 = arith.constant 0 : index
    %c2_49 = arith.constant 2 : index
    %c0_50 = arith.constant 0 : index
    %41 = vector.load %arg4[%c0_48, %c2_49, %c0_50] : memref<2x20x128xf32, #tpu.memory_space<vmem>>, vector<2x16x128xf32>
    %42 = vector.shape_cast %41 : vector<2x16x128xf32> to vector<32x128xf32>
    %c5 = arith.constant 5 : index
    %c0_51 = arith.constant 0 : index
    %c0_52 = arith.constant 0 : index
    %43 = vector.load %arg1[%c5, %c0_51, %c0_52] : memref<16x128x128xf32, #tpu.memory_space<vmem>>, vector<1x128x128xf32>
    %44 = vector.shape_cast %43 : vector<1x128x128xf32> to vector<128x128xf32>
    %cst_53 = arith.constant dense<0.000000e+00> : vector<32x128xf32>
    %45 = tpu.matmul %42, %44, %cst_53 {dimension_numbers = #tpu.dot_dimension_numbers<[1], [0], [0], [1], [0, 0, 1, 1], [], []>} : vector<32x128xf32>, vector<128x128xf32>, vector<32x128xf32> -> vector<32x128xf32>
    %46 = arith.addf %40, %45 : vector<32x128xf32>
    %c49 = arith.constant 49 : index
    %c0_54 = arith.constant 0 : index
    %47 = vector.load %arg2[%c49, %c0_54] : memref<56x128xf32, #tpu.memory_space<vmem>>, vector<1x128xf32>
    %48 = vector.broadcast %47 : vector<1x128xf32> to vector<32x128xf32>
    %49 = arith.addf %46, %48 : vector<32x128xf32>
    %cst_55 = arith.constant 0.000000e+00 : f32
    %50 = vector.broadcast %cst_55 : f32 to vector<32x128xf32>
    %51 = arith.maximumf %49, %50 : vector<32x128xf32>
    %52 = vector.shape_cast %51 : vector<32x128xf32> to vector<2x16x128xf32>
    %c0_56 = arith.constant 0 : index
    %c1_57 = arith.constant 1 : index
    %c0_58 = arith.constant 0 : index
    %53 = vector.load %arg4[%c0_56, %c1_57, %c0_58] : memref<2x20x128xf32, #tpu.memory_space<vmem>>, vector<2x16x128xf32>
    tpu.vector_store %arg4[%c0_56, %c1_57, %c0_58], %52 {strides = array<i32>} : memref<2x20x128xf32, #tpu.memory_space<vmem>>, vector<2x16x128xf32>,
    %c0_59 = arith.constant 0 : index
    %c0_60 = arith.constant 0 : index
    %c0_61 = arith.constant 0 : index
    %54 = vector.load %arg4[%c0_59, %c0_60, %c0_61] : memref<2x20x128xf32, #tpu.memory_space<vmem>>, vector<2x16x128xf32>
    %55 = vector.shape_cast %54 : vector<2x16x128xf32> to vector<32x128xf32>
    %c6 = arith.constant 6 : index
    %c0_62 = arith.constant 0 : index
    %c0_63 = arith.constant 0 : index
    %56 = vector.load %arg1[%c6, %c0_62, %c0_63] : memref<16x128x128xf32, #tpu.memory_space<vmem>>, vector<1x128x128xf32>
    %57 = vector.shape_cast %56 : vector<1x128x128xf32> to vector<128x128xf32>
    %cst_64 = arith.constant dense<0.000000e+00> : vector<32x128xf32>
    %58 = tpu.matmul %55, %57, %cst_64 {dimension_numbers = #tpu.dot_dimension_numbers<[1], [0], [0], [1], [0, 0, 1, 1], [], []>} : vector<32x128xf32>, vector<128x128xf32>, vector<32x128xf32> -> vector<32x128xf32>
    %c0_65 = arith.constant 0 : index
    %c1_66 = arith.constant 1 : index
    %c0_67 = arith.constant 0 : index
    %59 = vector.load %arg4[%c0_65, %c1_66, %c0_67] : memref<2x20x128xf32, #tpu.memory_space<vmem>>, vector<2x16x128xf32>
    %60 = vector.shape_cast %59 : vector<2x16x128xf32> to vector<32x128xf32>
    %c7 = arith.constant 7 : index
    %c0_68 = arith.constant 0 : index
    %c0_69 = arith.constant 0 : index
    %61 = vector.load %arg1[%c7, %c0_68, %c0_69] : memref<16x128x128xf32, #tpu.memory_space<vmem>>, vector<1x128x128xf32>
    %62 = vector.shape_cast %61 : vector<1x128x128xf32> to vector<128x128xf32>
    %cst_70 = arith.constant dense<0.000000e+00> : vector<32x128xf32>
    %63 = tpu.matmul %60, %62, %cst_70 {dimension_numbers = #tpu.dot_dimension_numbers<[1], [0], [0], [1], [0, 0, 1, 1], [], []>} : vector<32x128xf32>, vector<128x128xf32>, vector<32x128xf32> -> vector<32x128xf32>
    %64 = arith.addf %58, %63 : vector<32x128xf32>
    %c0_71 = arith.constant 0 : index
    %c2_72 = arith.constant 2 : index
    %c0_73 = arith.constant 0 : index
    %65 = vector.load %arg4[%c0_71, %c2_72, %c0_73] : memref<2x20x128xf32, #tpu.memory_space<vmem>>, vector<2x16x128xf32>
    %66 = vector.shape_cast %65 : vector<2x16x128xf32> to vector<32x128xf32>
    %c8 = arith.constant 8 : index
    %c0_74 = arith.constant 0 : index
    %c0_75 = arith.constant 0 : index
    %67 = vector.load %arg1[%c8, %c0_74, %c0_75] : memref<16x128x128xf32, #tpu.memory_space<vmem>>, vector<1x128x128xf32>
    %68 = vector.shape_cast %67 : vector<1x128x128xf32> to vector<128x128xf32>
    %cst_76 = arith.constant dense<0.000000e+00> : vector<32x128xf32>
    %69 = tpu.matmul %66, %68, %cst_76 {dimension_numbers = #tpu.dot_dimension_numbers<[1], [0], [0], [1], [0, 0, 1, 1], [], []>} : vector<32x128xf32>, vector<128x128xf32>, vector<32x128xf32> -> vector<32x128xf32>
    %70 = arith.addf %64, %69 : vector<32x128xf32>
    %c50 = arith.constant 50 : index
    %c0_77 = arith.constant 0 : index
    %71 = vector.load %arg2[%c50, %c0_77] : memref<56x128xf32, #tpu.memory_space<vmem>>, vector<1x128xf32>
    %72 = vector.broadcast %71 : vector<1x128xf32> to vector<32x128xf32>
    %73 = arith.addf %70, %72 : vector<32x128xf32>
    %74 = arith.addf %73, %27 : vector<32x128xf32>
    %cst_78 = arith.constant 0.000000e+00 : f32
    %75 = vector.broadcast %cst_78 : f32 to vector<32x128xf32>
    %76 = arith.maximumf %74, %75 : vector<32x128xf32>
    %77 = vector.shape_cast %76 : vector<32x128xf32> to vector<2x16x128xf32>
    %c0_79 = arith.constant 0 : index
    %c1_80 = arith.constant 1 : index
    %c0_81 = arith.constant 0 : index
    %78 = vector.load %arg4[%c0_79, %c1_80, %c0_81] : memref<2x20x128xf32, #tpu.memory_space<vmem>>, vector<2x16x128xf32>
    tpu.vector_store %arg4[%c0_79, %c1_80, %c0_81], %77 {strides = array<i32>} : memref<2x20x128xf32, #tpu.memory_space<vmem>>, vector<2x16x128xf32>,
    %c0_82 = arith.constant 0 : index
    %c0_83 = arith.constant 0 : index
    %79 = vector.load %arg2[%c0_82, %c0_83] : memref<56x128xf32, #tpu.memory_space<vmem>>, vector<48x40xf32>
    %c0_84 = arith.constant 0 : index
    %c0_85 = arith.constant 0 : index
    %c0_86 = arith.constant 0 : index
    %80 = vector.load %arg4[%c0_84, %c0_85, %c0_86] : memref<2x20x128xf32, #tpu.memory_space<vmem>>, vector<2x20x128xf32>
    %81 = vector.shape_cast %80 : vector<2x20x128xf32> to vector<40x128xf32>
    %cst_87 = arith.constant dense<0.000000e+00> : vector<48x128xf32>
    %82 = tpu.matmul %79, %81, %cst_87 {dimension_numbers = #tpu.dot_dimension_numbers<[1], [0], [0], [1], [0, 0, 1, 1], [], []>} : vector<48x40xf32>, vector<40x128xf32>, vector<48x128xf32> -> vector<48x128xf32>
    %83 = vector.extract_strided_slice %82 {offsets = [0, 0], sizes = [16, 128], strides = [1, 1]} : vector<48x128xf32> to vector<16x128xf32>
    %84 = vector.extract_strided_slice %82 {offsets = [16, 0], sizes = [16, 128], strides = [1, 1]} : vector<48x128xf32> to vector<16x128xf32>
    %85 = vector.extract_strided_slice %82 {offsets = [32, 0], sizes = [16, 128], strides = [1, 1]} : vector<48x128xf32> to vector<16x128xf32>
    %c9 = arith.constant 9 : index
    %c0_88 = arith.constant 0 : index
    %c0_89 = arith.constant 0 : index
    %86 = vector.load %arg1[%c9, %c0_88, %c0_89] : memref<16x128x128xf32, #tpu.memory_space<vmem>>, vector<1x128x128xf32>
    %87 = vector.shape_cast %86 : vector<1x128x128xf32> to vector<128x128xf32>
    %cst_90 = arith.constant dense<0.000000e+00> : vector<16x128xf32>
    %88 = tpu.matmul %84, %87, %cst_90 {dimension_numbers = #tpu.dot_dimension_numbers<[1], [0], [0], [1], [0, 0, 1, 1], [], []>} : vector<16x128xf32>, vector<128x128xf32>, vector<16x128xf32> -> vector<16x128xf32>
    %c51 = arith.constant 51 : index
    %c0_91 = arith.constant 0 : index
    %89 = vector.load %arg2[%c51, %c0_91] : memref<56x128xf32, #tpu.memory_space<vmem>>, vector<1x128xf32>
    %90 = vector.broadcast %89 : vector<1x128xf32> to vector<16x128xf32>
    %91 = arith.addf %88, %90 : vector<16x128xf32>
    %c10 = arith.constant 10 : index
    %c0_92 = arith.constant 0 : index
    %c0_93 = arith.constant 0 : index
    %92 = vector.load %arg1[%c10, %c0_92, %c0_93] : memref<16x128x128xf32, #tpu.memory_space<vmem>>, vector<1x128x128xf32>
    %93 = vector.shape_cast %92 : vector<1x128x128xf32> to vector<128x128xf32>
    %cst_94 = arith.constant dense<0.000000e+00> : vector<16x128xf32>
    %94 = tpu.matmul %83, %93, %cst_94 {dimension_numbers = #tpu.dot_dimension_numbers<[1], [0], [0], [1], [0, 0, 1, 1], [], []>} : vector<16x128xf32>, vector<128x128xf32>, vector<16x128xf32> -> vector<16x128xf32>
    %c11 = arith.constant 11 : index
    %c0_95 = arith.constant 0 : index
    %c0_96 = arith.constant 0 : index
    %95 = vector.load %arg1[%c11, %c0_95, %c0_96] : memref<16x128x128xf32, #tpu.memory_space<vmem>>, vector<1x128x128xf32>
    %96 = vector.shape_cast %95 : vector<1x128x128xf32> to vector<128x128xf32>
    %cst_97 = arith.constant dense<0.000000e+00> : vector<16x128xf32>
    %97 = tpu.matmul %84, %96, %cst_97 {dimension_numbers = #tpu.dot_dimension_numbers<[1], [0], [0], [1], [0, 0, 1, 1], [], []>} : vector<16x128xf32>, vector<128x128xf32>, vector<16x128xf32> -> vector<16x128xf32>
    %98 = arith.addf %94, %97 : vector<16x128xf32>
    %c12 = arith.constant 12 : index
    %c0_98 = arith.constant 0 : index
    %c0_99 = arith.constant 0 : index
    %99 = vector.load %arg1[%c12, %c0_98, %c0_99] : memref<16x128x128xf32, #tpu.memory_space<vmem>>, vector<1x128x128xf32>
    %100 = vector.shape_cast %99 : vector<1x128x128xf32> to vector<128x128xf32>
    %cst_100 = arith.constant dense<0.000000e+00> : vector<16x128xf32>
    %101 = tpu.matmul %85, %100, %cst_100 {dimension_numbers = #tpu.dot_dimension_numbers<[1], [0], [0], [1], [0, 0, 1, 1], [], []>} : vector<16x128xf32>, vector<128x128xf32>, vector<16x128xf32> -> vector<16x128xf32>
    %102 = arith.addf %98, %101 : vector<16x128xf32>
    %c52 = arith.constant 52 : index
    %c0_101 = arith.constant 0 : index
    %103 = vector.load %arg2[%c52, %c0_101] : memref<56x128xf32, #tpu.memory_space<vmem>>, vector<1x128xf32>
    %104 = vector.broadcast %103 : vector<1x128xf32> to vector<16x128xf32>
    %105 = arith.addf %102, %104 : vector<16x128xf32>
    %cst_102 = arith.constant 0.000000e+00 : f32
    %106 = vector.broadcast %cst_102 : f32 to vector<16x128xf32>
    %107 = arith.maximumf %105, %106 : vector<16x128xf32>
    %108 = vector.shape_cast %107 : vector<16x128xf32> to vector<2x8x128xf32>
    %c0_103 = arith.constant 0 : index
    %c1_104 = arith.constant 1 : index
    %c0_105 = arith.constant 0 : index
    %109 = vector.load %arg5[%c0_103, %c1_104, %c0_105] : memref<2x10x128xf32, #tpu.memory_space<vmem>>, vector<2x8x128xf32>
    tpu.vector_store %arg5[%c0_103, %c1_104, %c0_105], %108 {strides = array<i32>} : memref<2x10x128xf32, #tpu.memory_space<vmem>>, vector<2x8x128xf32>,
    %c0_106 = arith.constant 0 : index
    %c0_107 = arith.constant 0 : index
    %c0_108 = arith.constant 0 : index
    %110 = vector.load %arg5[%c0_106, %c0_107, %c0_108] : memref<2x10x128xf32, #tpu.memory_space<vmem>>, vector<2x8x128xf32>
    %111 = vector.shape_cast %110 : vector<2x8x128xf32> to vector<16x128xf32>
    %c13 = arith.constant 13 : index
    %c0_109 = arith.constant 0 : index
    %c0_110 = arith.constant 0 : index
    %112 = vector.load %arg1[%c13, %c0_109, %c0_110] : memref<16x128x128xf32, #tpu.memory_space<vmem>>, vector<1x128x128xf32>
    %113 = vector.shape_cast %112 : vector<1x128x128xf32> to vector<128x128xf32>
    %cst_111 = arith.constant dense<0.000000e+00> : vector<16x128xf32>
    %114 = tpu.matmul %111, %113, %cst_111 {dimension_numbers = #tpu.dot_dimension_numbers<[1], [0], [0], [1], [0, 0, 1, 1], [], []>} : vector<16x128xf32>, vector<128x128xf32>, vector<16x128xf32> -> vector<16x128xf32>
    %c0_112 = arith.constant 0 : index
    %c1_113 = arith.constant 1 : index
    %c0_114 = arith.constant 0 : index
    %115 = vector.load %arg5[%c0_112, %c1_113, %c0_114] : memref<2x10x128xf32, #tpu.memory_space<vmem>>, vector<2x8x128xf32>
    %116 = vector.shape_cast %115 : vector<2x8x128xf32> to vector<16x128xf32>
    %c14 = arith.constant 14 : index
    %c0_115 = arith.constant 0 : index
    %c0_116 = arith.constant 0 : index
    %117 = vector.load %arg1[%c14, %c0_115, %c0_116] : memref<16x128x128xf32, #tpu.memory_space<vmem>>, vector<1x128x128xf32>
    %118 = vector.shape_cast %117 : vector<1x128x128xf32> to vector<128x128xf32>
    %cst_117 = arith.constant dense<0.000000e+00> : vector<16x128xf32>
    %119 = tpu.matmul %116, %118, %cst_117 {dimension_numbers = #tpu.dot_dimension_numbers<[1], [0], [0], [1], [0, 0, 1, 1], [], []>} : vector<16x128xf32>, vector<128x128xf32>, vector<16x128xf32> -> vector<16x128xf32>
    %120 = arith.addf %114, %119 : vector<16x128xf32>
    %c0_118 = arith.constant 0 : index
    %c2_119 = arith.constant 2 : index
    %c0_120 = arith.constant 0 : index
    %121 = vector.load %arg5[%c0_118, %c2_119, %c0_120] : memref<2x10x128xf32, #tpu.memory_space<vmem>>, vector<2x8x128xf32>
    %122 = vector.shape_cast %121 : vector<2x8x128xf32> to vector<16x128xf32>
    %c15 = arith.constant 15 : index
    %c0_121 = arith.constant 0 : index
    %c0_122 = arith.constant 0 : index
    %123 = vector.load %arg1[%c15, %c0_121, %c0_122] : memref<16x128x128xf32, #tpu.memory_space<vmem>>, vector<1x128x128xf32>
    %124 = vector.shape_cast %123 : vector<1x128x128xf32> to vector<128x128xf32>
    %cst_123 = arith.constant dense<0.000000e+00> : vector<16x128xf32>
    %125 = tpu.matmul %122, %124, %cst_123 {dimension_numbers = #tpu.dot_dimension_numbers<[1], [0], [0], [1], [0, 0, 1, 1], [], []>} : vector<16x128xf32>, vector<128x128xf32>, vector<16x128xf32> -> vector<16x128xf32>
    %126 = arith.addf %120, %125 : vector<16x128xf32>
    %c53 = arith.constant 53 : index
    %c0_124 = arith.constant 0 : index
    %127 = vector.load %arg2[%c53, %c0_124] : memref<56x128xf32, #tpu.memory_space<vmem>>, vector<1x128xf32>
    %128 = vector.broadcast %127 : vector<1x128xf32> to vector<16x128xf32>
    %129 = arith.addf %126, %128 : vector<16x128xf32>
    %130 = arith.addf %129, %91 : vector<16x128xf32>
    %cst_125 = arith.constant 0.000000e+00 : f32
    %131 = vector.broadcast %cst_125 : f32 to vector<16x128xf32>
    %132 = arith.maximumf %130, %131 : vector<16x128xf32>
    %c0_126 = arith.constant 0 : index
    %c0_127 = arith.constant 0 : index
    %133 = vector.load %arg3[%c0_126, %c0_127] : memref<16x128xf32, #tpu.memory_space<vmem>>, vector<16x128xf32>
    tpu.vector_store %arg3[%c0_126, %c0_127], %132 {strides = array<i32>} : memref<16x128xf32, #tpu.memory_space<vmem>>, vector<16x128xf32>,
    return
  }
}

</mosaic_0001>

<llo_original>
// kernel: resnet_forward.1
$region0: #{resnet_forward.1}
  #allocation0 [shape = 'u32[]', space=smem, size = 0x4, offset = 0x4, fixed_abs, tag = 'smem constant byte address 0x4 - core index']
  #allocation1 [shape = 'u32[144,128]{1,0:T(1,128)}', space=vmem, size = 0x12000, scoped, tag = 'internal scratch']
  #allocation2 [shape = 'f32[2,20,128]{2,1,0:T(8,128)}', space=vmem, size = 0x6000, scoped, tag = 'scratch operand']
  #allocation3 [shape = 'f32[2,10,128]{2,1,0:T(8,128)}', space=vmem, size = 0x4000, scoped, tag = 'scratch operand']
  %s0 = inlined_call_operand.vmem [shape: f32[2,16,64], index: 0, kind: input, shape index: {}]
  %s1 = inlined_call_operand.hbm [shape: f32[16,128,128], index: 1, kind: input, shape index: {}]
  %s2 = inlined_call_operand.vmem [shape: f32[56,128], index: 2, kind: input, shape index: {}]
  %s3 = inlined_call_operand.vmem [shape: f32[16,128], index: 3, kind: output, shape index: {}]
  %s4 = sld [smem:[#allocation0]]
  $region26: #{resnet_forward.1} parent=0
    _
  %s6 = ssub.s32 1, %s4
  %s7 = scalar_select 0, %s6, %s4
  $region1: #{resnet_forward.1} parent=0
    #allocation4 [shape = 'u8[1048576]{0}', space=vmem, size = 0x100000, scoped, tag = 'input window, operand 1, single buffered']
    #allocation5 [shape = 's32[1]{0}', space=sflag, size = 0x4, scoped, tag = 'scoped memory for resnet_forward.1']
    %8 = vsyncpa [#allocation5], 0
    // Predicated region
    $region2: #{resnet_forward.1} parent=1 // pred_check
      _
    $region3: #{resnet_forward.1} parent=1 // pred_check_branch
      %10 = sbr.rel (0) target = $region5
    $region4: #{resnet_forward.1} parent=1 // pred_region
      _
    $region5: #{resnet_forward.1} parent=1 // pred_fallthru
      _
    // Predicated region
    $region6: #{resnet_forward.1} parent=1 // pred_check
      _
    $region7: #{resnet_forward.1} parent=1 // pred_check_branch
      %12 = sbr.rel (0) target = $region9
    $region8: #{resnet_forward.1} parent=1 // pred_region
      %s14 = ssub.s32 32768, 32768
      %15 = vsyncadd [#allocation5], %s14
      %s16 = sshll.u32 [#allocation4], 4
      %s17 = int_to_ptr.vmem [resolvable:$true] %s16
      %22 = dma.hbm_to_vmem [thread:$0]  %s1, 32768, %s17, [#allocation5], 128, 128, 8
    $region9: #{resnet_forward.1} parent=1 // pred_fallthru
      _
    // Predicated region
    $region10: #{resnet_forward.1} parent=1 // pred_check
      _
    $region11: #{resnet_forward.1} parent=1 // pred_check_branch
      %24 = sbr.rel (0) target = $region13
    $region12: #{resnet_forward.1} parent=1 // pred_region
      _
    $region13: #{resnet_forward.1} parent=1 // pred_fallthru
      _
    // Predicated region
    $region14: #{resnet_forward.1} parent=1 // pred_check
      _
    $region15: #{resnet_forward.1} parent=1 // pred_check_branch
      %26 = sbr.rel (0) target = $region17
    $region16: #{resnet_forward.1} parent=1 // pred_region
      %27 = dma.done [#allocation5], 32768
    $region17: #{resnet_forward.1} parent=1 // pred_fallthru
      _
    %28 = vst [vmem:[#allocation2] sm:$0xff] 0.0
    %29 = vst [vmem:[#allocation2 + $0x8] sm:$0xff] 0.0
    %30 = vst [vmem:[#allocation2 + $0x10] sm:$0xf] 0.0
    %31 = vst [vmem:[#allocation2 + $0x18] sm:$0xff] 0.0
    %32 = vst [vmem:[#allocation2 + $0x20] sm:$0xff] 0.0
    %33 = vst [vmem:[#allocation2 + $0x28] sm:$0xf] 0.0
    %34 = vst [vmem:[#allocation3] sm:$0xff] 0.0
    %35 = vst [vmem:[#allocation3 + $0x8] sm:$0x3] 0.0
    %36 = vst [vmem:[#allocation3 + $0x10] sm:$0xff] 0.0
    %37 = vst [vmem:[#allocation3 + $0x18] sm:$0x3] 0.0
    %v38 = vld [vmem:[%s0] sm:$0xff]
    %v39 = vld [vmem:[%s0 + $0x8] sm:$0xff]
    %v40 = vld [vmem:[%s0 + $0x10] sm:$0xff]
    %v41 = vld [vmem:[%s0 + $0x18] sm:$0xff]
    %vm42 = vcmask 523264
    %43 = vst.msk [vmem:[#allocation2 + $0x1] sm:$0xff] %vm42, %v38
    %44 = vst.msk [vmem:[#allocation2 + $0x9] sm:$0xff] %vm42, %v39
    %45 = vst.msk [vmem:[#allocation2 + $0x19] sm:$0xff] %vm42, %v40
    %46 = vst.msk [vmem:[#allocation2 + $0x21] sm:$0xff] %vm42, %v41
    %v47 = vld [vmem:[#allocation2] sm:$0xff]
    %v48 = vld [vmem:[#allocation2 + $0x8] sm:$0xff]
    %v49 = vld [vmem:[#allocation2 + $0x18] sm:$0xff]
    %v50 = vld [vmem:[#allocation2 + $0x20] sm:$0xff]
    %v51 = vld [vmem:[#allocation4] sm:$0xff]
    %v52 = vld [vmem:[#allocation4 + $0x8] sm:$0xff]
    %v53 = vld [vmem:[#allocation4 + $0x10] sm:$0xff]
    %v54 = vld [vmem:[#allocation4 + $0x18] sm:$0xff]
    %v55 = vld [vmem:[#allocation4 + $0x20] sm:$0xff]
    %v56 = vld [vmem:[#allocation4 + $0x28] sm:$0xff]
    %v57 = vld [vmem:[#allocation4 + $0x30] sm:$0xff]
    %v58 = vld [vmem:[#allocation4 + $0x38] sm:$0xff]
    %v59 = vld [vmem:[#allocation4 + $0x40] sm:$0xff]
    %v60 = vld [vmem:[#allocation4 + $0x48] sm:$0xff]
    %v61 = vld [vmem:[#allocation4 + $0x50] sm:$0xff]
    %v62 = vld [vmem:[#allocation4 + $0x58] sm:$0xff]
    %v63 = vld [vmem:[#allocation4 + $0x60] sm:$0xff]
    %v64 = vld [vmem:[#allocation4 + $0x68] sm:$0xff]
    %v65 = vld [vmem:[#allocation4 + $0x70] sm:$0xff]
    %v66 = vld [vmem:[#allocation4 + $0x78] sm:$0xff]
    %v67 = vld [vmem:[#allocation2 + $0x1] sm:$0xff]
    %v68 = vld [vmem:[#allocation2 + $0x9] sm:$0xff]
    %v69 = vld [vmem:[#allocation2 + $0x19] sm:$0xff]
    %v70 = vld [vmem:[#allocation2 + $0x21] sm:$0xff]
    %s71 = scalar_lea.vmem [#allocation4], 128
    %v72 = vld [vmem:[%s71] sm:$0xff]
    %v73 = vld [vmem:[%s71 + $0x8] sm:$0xff]
    %v74 = vld [vmem:[%s71 + $0x10] sm:$0xff]
    %v75 = vld [vmem:[%s71 + $0x18] sm:$0xff]
    %v76 = vld [vmem:[%s71 + $0x20] sm:$0xff]
    %v77 = vld [vmem:[%s71 + $0x28] sm:$0xff]
    %v78 = vld [vmem:[%s71 + $0x30] sm:$0xff]
    %v79 = vld [vmem:[%s71 + $0x38] sm:$0xff]
    %v80 = vld [vmem:[%s71 + $0x40] sm:$0xff]
    %v81 = vld [vmem:[%s71 + $0x48] sm:$0xff]
    %v82 = vld [vmem:[%s71 + $0x50] sm:$0xff]
    %v83 = vld [vmem:[%s71 + $0x58] sm:$0xff]
    %v84 = vld [vmem:[%s71 + $0x60] sm:$0xff]
    %v85 = vld [vmem:[%s71 + $0x68] sm:$0xff]
    %v86 = vld [vmem:[%s71 + $0x70] sm:$0xff]
    %v87 = vld [vmem:[%s71 + $0x78] sm:$0xff]
    %88 = vmatprep.subr.mxu0 0.0
    %89 = vmatpush1.msra.mxu0 %v87
    %90 = vmatprep.subr.mxu0 0.0
    %91 = vmatpush1.msra.mxu0 %v86
    %92 = vmatprep.subr.mxu0 0.0
    %93 = vmatpush1.msra.mxu0 %v85
    %94 = vmatprep.subr.mxu0 0.0
    %95 = vmatpush1.msra.mxu0 %v84
    %96 = vmatprep.subr.mxu0 0.0
    %97 = vmatpush1.msra.mxu0 %v83
    %98 = vmatprep.subr.mxu0 0.0
    %99 = vmatpush1.msra.mxu0 %v82
    %100 = vmatprep.subr.mxu0 0.0
    %101 = vmatpush1.msra.mxu0 %v81
    %102 = vmatprep.subr.mxu0 0.0
    %103 = vmatpush1.msra.mxu0 %v80
    %104 = vmatprep.subr.mxu0 0.0
    %105 = vmatpush1.msra.mxu0 %v79
    %106 = vmatprep.subr.mxu0 0.0
    %107 = vmatpush1.msra.mxu0 %v78
    %108 = vmatprep.subr.mxu0 0.0
    %109 = vmatpush1.msra.mxu0 %v77
    %110 = vmatprep.subr.mxu0 0.0
    %111 = vmatpush1.msra.mxu0 %v76
    %112 = vmatprep.subr.mxu0 0.0
    %113 = vmatpush1.msra.mxu0 %v75
    %114 = vmatprep.subr.mxu0 0.0
    %115 = vmatpush1.msra.mxu0 %v74
    %116 = vmatprep.subr.mxu0 0.0
    %117 = vmatpush1.msra.mxu0 %v73
    %118 = vmatprep.subr.mxu0 0.0
    %119 = vmatpush1.msra.mxu0 %v72
    %120 = vmatprep.subr.mxu0 0.0
    %121 = vmatpush2.msra.mxu0 0.0
    %122 = vmatprep.subr.mxu0 0.0
    %123 = vmatpush2.msra.mxu0 0.0
    %124 = vmatprep.subr.mxu0 0.0
    %125 = vmatpush2.msra.mxu0 0.0
    %126 = vmatprep.subr.mxu0 0.0
    %127 = vmatpush2.msra.mxu0 0.0
    %128 = vmatprep.subr.mxu0 0.0
    %129 = vmatpush2.msra.mxu0 0.0
    %130 = vmatprep.subr.mxu0 0.0
    %131 = vmatpush2.msra.mxu0 0.0
    %132 = vmatprep.subr.mxu0 0.0
    %133 = vmatpush2.msra.mxu0 0.0
    %134 = vmatprep.subr.mxu0 0.0
    %135 = vmatpush2.msra.mxu0 0.0
    %136 = vmatprep.subr.mxu0 0.0
    %137 = vmatpush2.msra.mxu0 0.0
    %138 = vmatprep.subr.mxu0 0.0
    %139 = vmatpush2.msra.mxu0 0.0
    %140 = vmatprep.subr.mxu0 0.0
    %141 = vmatpush2.msra.mxu0 0.0
    %142 = vmatprep.subr.mxu0 0.0
    %143 = vmatpush2.msra.mxu0 0.0
    %144 = vmatprep.subr.mxu0 0.0
    %145 = vmatpush2.msra.mxu0 0.0
    %146 = vmatprep.subr.mxu0 0.0
    %147 = vmatpush2.msra.mxu0 0.0
    %148 = vmatprep.subr.mxu0 0.0
    %149 = vmatpush2.msra.mxu0 0.0
    %150 = vmatprep.subr.mxu0 0.0
    %151 = vmatpush2.msra.mxu0 0.0
    %152 = vmatprep.mubr.f32.mxu0 0.0
    %153 = vmatmul.mubr.f32.gmra.mxu0 %v67
    %v154 = vpop.f32.mrf.mxu0
    %v155 = vadd.f32 0.0, %v154
    %v156 = vpop.f32.mrf.mxu0
    %157 = vmatprep.mubr.f32.mxu0 0.0
    %158 = vmatmul.mubr.f32.gmra.mxu0 %v68
    %v159 = vpop.f32.mrf.mxu0
    %v160 = vadd.f32 0.0, %v159
    %v161 = vpop.f32.mrf.mxu0
    %162 = vmatprep.mubr.f32.mxu0 0.0
    %163 = vmatmul.mubr.f32.gmra.mxu0 %v69
    %v164 = vpop.f32.mrf.mxu0
    %v165 = vadd.f32 0.0, %v164
    %v166 = vpop.f32.mrf.mxu0
    %167 = vmatprep.mubr.f32.mxu0 0.0
    %168 = vmatmul.mubr.f32.gmra.mxu0 %v70
    %v169 = vpop.f32.mrf.mxu0
    %v170 = vadd.f32 0.0, %v169
    %v171 = vpop.f32.mrf.mxu0
    %172 = vdwg.mxu0
    %173 = vmatprep.subr.mxu0 0.0
    %174 = vmatpush1.msra.mxu0 %v66
    %175 = vmatprep.subr.mxu0 0.0
    %176 = vmatpush1.msra.mxu0 %v65
    %177 = vmatprep.subr.mxu0 0.0
    %178 = vmatpush1.msra.mxu0 %v64
    %179 = vmatprep.subr.mxu0 0.0
    %180 = vmatpush1.msra.mxu0 %v63
    %181 = vmatprep.subr.mxu0 0.0
    %182 = vmatpush1.msra.mxu0 %v62
    %183 = vmatprep.subr.mxu0 0.0
    %184 = vmatpush1.msra.mxu0 %v61
    %185 = vmatprep.subr.mxu0 0.0
    %186 = vmatpush1.msra.mxu0 %v60
    %187 = vmatprep.subr.mxu0 0.0
    %188 = vmatpush1.msra.mxu0 %v59
    %189 = vmatprep.subr.mxu0 0.0
    %190 = vmatpush1.msra.mxu0 %v58
    %191 = vmatprep.subr.mxu0 0.0
    %192 = vmatpush1.msra.mxu0 %v57
    %193 = vmatprep.subr.mxu0 0.0
    %194 = vmatpush1.msra.mxu0 %v56
    %195 = vmatprep.subr.mxu0 0.0
    %196 = vmatpush1.msra.mxu0 %v55
    %197 = vmatprep.subr.mxu0 0.0
    %198 = vmatpush1.msra.mxu0 %v54
    %199 = vmatprep.subr.mxu0 0.0
    %200 = vmatpush1.msra.mxu0 %v53
    %201 = vmatprep.subr.mxu0 0.0
    %202 = vmatpush1.msra.mxu0 %v52
    %203 = vmatprep.subr.mxu0 0.0
    %204 = vmatpush1.msra.mxu0 %v51
    %205 = vmatprep.subr.mxu0 0.0
    %206 = vmatpush2.msra.mxu0 0.0
    %207 = vmatprep.subr.mxu0 0.0
    %208 = vmatpush2.msra.mxu0 0.0
    %209 = vmatprep.subr.mxu0 0.0
    %210 = vmatpush2.msra.mxu0 0.0
    %211 = vmatprep.subr.mxu0 0.0
    %212 = vmatpush2.msra.mxu0 0.0
    %213 = vmatprep.subr.mxu0 0.0
    %214 = vmatpush2.msra.mxu0 0.0
    %215 = vmatprep.subr.mxu0 0.0
    %216 = vmatpush2.msra.mxu0 0.0
    %217 = vmatprep.subr.mxu0 0.0
    %218 = vmatpush2.msra.mxu0 0.0
    %219 = vmatprep.subr.mxu0 0.0
    %220 = vmatpush2.msra.mxu0 0.0
    %221 = vmatprep.subr.mxu0 0.0
    %222 = vmatpush2.msra.mxu0 0.0
    %223 = vmatprep.subr.mxu0 0.0
    %224 = vmatpush2.msra.mxu0 0.0
    %225 = vmatprep.subr.mxu0 0.0
    %226 = vmatpush2.msra.mxu0 0.0
    %227 = vmatprep.subr.mxu0 0.0
    %228 = vmatpush2.msra.mxu0 0.0
    %229 = vmatprep.subr.mxu0 0.0
    %230 = vmatpush2.msra.mxu0 0.0
    %231 = vmatprep.subr.mxu0 0.0
    %232 = vmatpush2.msra.mxu0 0.0
    %233 = vmatprep.subr.mxu0 0.0
    %234 = vmatpush2.msra.mxu0 0.0
    %235 = vmatprep.subr.mxu0 0.0
    %236 = vmatpush2.msra.mxu0 0.0
    %237 = vmatprep.mubr.f32.mxu0 0.0
    %238 = vmatmul.mubr.f32.gmra.mxu0 %v47
    %v239 = vpop.f32.mrf.mxu0
    %v240 = vadd.f32 %v155, %v239
    %v241 = vpop.f32.mrf.mxu0
    %242 = vmatprep.mubr.f32.mxu0 0.0
    %243 = vmatmul.mubr.f32.gmra.mxu0 %v48
    %v244 = vpop.f32.mrf.mxu0
    %v245 = vadd.f32 %v160, %v244
    %v246 = vpop.f32.mrf.mxu0
    %247 = vmatprep.mubr.f32.mxu0 0.0
    %248 = vmatmul.mubr.f32.gmra.mxu0 %v49
    %v249 = vpop.f32.mrf.mxu0
    %v250 = vadd.f32 %v165, %v249
    %v251 = vpop.f32.mrf.mxu0
    %252 = vmatprep.mubr.f32.mxu0 0.0
    %253 = vmatmul.mubr.f32.gmra.mxu0 %v50
    %v254 = vpop.f32.mrf.mxu0
    %v255 = vadd.f32 %v170, %v254
    %v256 = vpop.f32.mrf.mxu0
    %257 = vdwg.mxu0
    %v258 = vld [vmem:[#allocation2 + $0x2] sm:$0xff]
    %v259 = vld [vmem:[#allocation2 + $0xa] sm:$0xff]
    %v260 = vld [vmem:[#allocation2 + $0x1a] sm:$0xff]
    %v261 = vld [vmem:[#allocation2 + $0x22] sm:$0xff]
    %s262 = scalar_lea.vmem [#allocation4], 256
    %v263 = vld [vmem:[%s262] sm:$0xff]
    %v264 = vld [vmem:[%s262 + $0x8] sm:$0xff]
    %v265 = vld [vmem:[%s262 + $0x10] sm:$0xff]
    %v266 = vld [vmem:[%s262 + $0x18] sm:$0xff]
    %v267 = vld [vmem:[%s262 + $0x20] sm:$0xff]
    %v268 = vld [vmem:[%s262 + $0x28] sm:$0xff]
    %v269 = vld [vmem:[%s262 + $0x30] sm:$0xff]
    %v270 = vld [vmem:[%s262 + $0x38] sm:$0xff]
    %v271 = vld [vmem:[%s262 + $0x40] sm:$0xff]
    %v272 = vld [vmem:[%s262 + $0x48] sm:$0xff]
    %v273 = vld [vmem:[%s262 + $0x50] sm:$0xff]
    %v274 = vld [vmem:[%s262 + $0x58] sm:$0xff]
    %v275 = vld [vmem:[%s262 + $0x60] sm:$0xff]
    %v276 = vld [vmem:[%s262 + $0x68] sm:$0xff]
    %v277 = vld [vmem:[%s262 + $0x70] sm:$0xff]
    %v278 = vld [vmem:[%s262 + $0x78] sm:$0xff]
    %279 = vmatprep.subr.mxu0 0.0
    %280 = vmatpush1.msra.mxu0 %v278
    %281 = vmatprep.subr.mxu0 0.0
    %282 = vmatpush1.msra.mxu0 %v277
    %283 = vmatprep.subr.mxu0 0.0
    %284 = vmatpush1.msra.mxu0 %v276
    %285 = vmatprep.subr.mxu0 0.0
    %286 = vmatpush1.msra.mxu0 %v275
    %287 = vmatprep.subr.mxu0 0.0
    %288 = vmatpush1.msra.mxu0 %v274
    %289 = vmatprep.subr.mxu0 0.0
    %290 = vmatpush1.msra.mxu0 %v273
    %291 = vmatprep.subr.mxu0 0.0
    %292 = vmatpush1.msra.mxu0 %v272
    %293 = vmatprep.subr.mxu0 0.0
    %294 = vmatpush1.msra.mxu0 %v271
    %295 = vmatprep.subr.mxu0 0.0
    %296 = vmatpush1.msra.mxu0 %v270
    %297 = vmatprep.subr.mxu0 0.0
    %298 = vmatpush1.msra.mxu0 %v269
    %299 = vmatprep.subr.mxu0 0.0
    %300 = vmatpush1.msra.mxu0 %v268
    %301 = vmatprep.subr.mxu0 0.0
    %302 = vmatpush1.msra.mxu0 %v267
    %303 = vmatprep.subr.mxu0 0.0
    %304 = vmatpush1.msra.mxu0 %v266
    %305 = vmatprep.subr.mxu0 0.0
    %306 = vmatpush1.msra.mxu0 %v265
    %307 = vmatprep.subr.mxu0 0.0
    %308 = vmatpush1.msra.mxu0 %v264
    %309 = vmatprep.subr.mxu0 0.0
    %310 = vmatpush1.msra.mxu0 %v263
    %311 = vmatprep.subr.mxu0 0.0
    %312 = vmatpush2.msra.mxu0 0.0
    %313 = vmatprep.subr.mxu0 0.0
    %314 = vmatpush2.msra.mxu0 0.0
    %315 = vmatprep.subr.mxu0 0.0
    %316 = vmatpush2.msra.mxu0 0.0
    %317 = vmatprep.subr.mxu0 0.0
    %318 = vmatpush2.msra.mxu0 0.0
    %319 = vmatprep.subr.mxu0 0.0
    %320 = vmatpush2.msra.mxu0 0.0
    %321 = vmatprep.subr.mxu0 0.0
    %322 = vmatpush2.msra.mxu0 0.0
    %323 = vmatprep.subr.mxu0 0.0
    %324 = vmatpush2.msra.mxu0 0.0
    %325 = vmatprep.subr.mxu0 0.0
    %326 = vmatpush2.msra.mxu0 0.0
    %327 = vmatprep.subr.mxu0 0.0
    %328 = vmatpush2.msra.mxu0 0.0
    %329 = vmatprep.subr.mxu0 0.0
    %330 = vmatpush2.msra.mxu0 0.0
    %331 = vmatprep.subr.mxu0 0.0
    %332 = vmatpush2.msra.mxu0 0.0
    %333 = vmatprep.subr.mxu0 0.0
    %334 = vmatpush2.msra.mxu0 0.0
    %335 = vmatprep.subr.mxu0 0.0
    %336 = vmatpush2.msra.mxu0 0.0
    %337 = vmatprep.subr.mxu0 0.0
    %338 = vmatpush2.msra.mxu0 0.0
    %339 = vmatprep.subr.mxu0 0.0
    %340 = vmatpush2.msra.mxu0 0.0
    %341 = vmatprep.subr.mxu0 0.0
    %342 = vmatpush2.msra.mxu0 0.0
    %343 = vmatprep.mubr.f32.mxu0 0.0
    %344 = vmatmul.mubr.f32.gmra.mxu0 %v258
    %v345 = vpop.f32.mrf.mxu0
    %v346 = vadd.f32 0.0, %v345
    %v347 = vpop.f32.mrf.mxu0
    %348 = vmatprep.mubr.f32.mxu0 0.0
    %349 = vmatmul.mubr.f32.gmra.mxu0 %v259
    %v350 = vpop.f32.mrf.mxu0
    %v351 = vadd.f32 0.0, %v350
    %v352 = vpop.f32.mrf.mxu0
    %353 = vmatprep.mubr.f32.mxu0 0.0
    %354 = vmatmul.mubr.f32.gmra.mxu0 %v260
    %v355 = vpop.f32.mrf.mxu0
    %v356 = vadd.f32 0.0, %v355
    %v357 = vpop.f32.mrf.mxu0
    %358 = vmatprep.mubr.f32.mxu0 0.0
    %359 = vmatmul.mubr.f32.gmra.mxu0 %v261
    %v360 = vpop.f32.mrf.mxu0
    %v361 = vadd.f32 0.0, %v360
    %v362 = vpop.f32.mrf.mxu0
    %363 = vdwg.mxu0
    %v364 = vadd.f32 %v240, %v346
    %v365 = vadd.f32 %v245, %v351
    %v366 = vadd.f32 %v250, %v356
    %v367 = vadd.f32 %v255, %v361
    %v368 = vld [vmem:[%s2 + $0x30] sm:$0x1]
    %v369 = vlaneseq
    %v370 = vshrl.u32 %v369, 7
    %v371 = vsub.s32 0, %v370
    %v372 = vrot.slane %v368, %v371
    %v373 = vadd.f32 %v364, %v372
    %v374 = vadd.f32 %v365, %v372
    %v375 = vadd.f32 %v366, %v372
    %v376 = vadd.f32 %v367, %v372
    %v377 = vmax.f32 %v373, 0.0
    %v378 = vmax.f32 %v374, 0.0
    %v379 = vmax.f32 %v375, 0.0
    %v380 = vmax.f32 %v376, 0.0
    %381 = vst [vmem:[#allocation2 + $0x1] sm:$0xff] %v377
    %382 = vst [vmem:[#allocation2 + $0x9] sm:$0xff] %v378
    %383 = vst [vmem:[#allocation2 + $0x19] sm:$0xff] %v379
    %384 = vst [vmem:[#allocation2 + $0x21] sm:$0xff] %v380
    %v385 = vld [vmem:[#allocation2] sm:$0xff]
    %v386 = vld [vmem:[#allocation2 + $0x8] sm:$0xff]
    %v387 = vld [vmem:[#allocation2 + $0x18] sm:$0xff]
    %v388 = vld [vmem:[#allocation2 + $0x20] sm:$0xff]
    %s389 = scalar_lea.vmem [#allocation4], 384
    %v390 = vld [vmem:[%s389] sm:$0xff]
    %v391 = vld [vmem:[%s389 + $0x8] sm:$0xff]
    %v392 = vld [vmem:[%s389 + $0x10] sm:$0xff]
    %v393 = vld [vmem:[%s389 + $0x18] sm:$0xff]
    %v394 = vld [vmem:[%s389 + $0x20] sm:$0xff]
    %v395 = vld [vmem:[%s389 + $0x28] sm:$0xff]
    %v396 = vld [vmem:[%s389 + $0x30] sm:$0xff]
    %v397 = vld [vmem:[%s389 + $0x38] sm:$0xff]
    %v398 = vld [vmem:[%s389 + $0x40] sm:$0xff]
    %v399 = vld [vmem:[%s389 + $0x48] sm:$0xff]
    %v400 = vld [vmem:[%s389 + $0x50] sm:$0xff]
    %v401 = vld [vmem:[%s389 + $0x58] sm:$0xff]
    %v402 = vld [vmem:[%s389 + $0x60] sm:$0xff]
    %v403 = vld [vmem:[%s389 + $0x68] sm:$0xff]
    %v404 = vld [vmem:[%s389 + $0x70] sm:$0xff]
    %v405 = vld [vmem:[%s389 + $0x78] sm:$0xff]
    %v406 = vld [vmem:[#allocation2 + $0x1] sm:$0xff]
    %v407 = vld [vmem:[#allocation2 + $0x9] sm:$0xff]
    %v408 = vld [vmem:[#allocation2 + $0x19] sm:$0xff]
    %v409 = vld [vmem:[#allocation2 + $0x21] sm:$0xff]
    %s410 = scalar_lea.vmem [#allocation4], 512
    %v411 = vld [vmem:[%s410] sm:$0xff]
    %v412 = vld [vmem:[%s410 + $0x8] sm:$0xff]
    %v413 = vld [vmem:[%s410 + $0x10] sm:$0xff]
    %v414 = vld [vmem:[%s410 + $0x18] sm:$0xff]
    %v415 = vld [vmem:[%s410 + $0x20] sm:$0xff]
    %v416 = vld [vmem:[%s410 + $0x28] sm:$0xff]
    %v417 = vld [vmem:[%s410 + $0x30] sm:$0xff]
    %v418 = vld [vmem:[%s410 + $0x38] sm:$0xff]
    %v419 = vld [vmem:[%s410 + $0x40] sm:$0xff]
    %v420 = vld [vmem:[%s410 + $0x48] sm:$0xff]
    %v421 = vld [vmem:[%s410 + $0x50] sm:$0xff]
    %v422 = vld [vmem:[%s410 + $0x58] sm:$0xff]
    %v423 = vld [vmem:[%s410 + $0x60] sm:$0xff]
    %v424 = vld [vmem:[%s410 + $0x68] sm:$0xff]
    %v425 = vld [vmem:[%s410 + $0x70] sm:$0xff]
    %v426 = vld [vmem:[%s410 + $0x78] sm:$0xff]
    %427 = vmatprep.subr.mxu0 0.0
    %428 = vmatpush1.msra.mxu0 %v426
    %429 = vmatprep.subr.mxu0 0.0
    %430 = vmatpush1.msra.mxu0 %v425
    %431 = vmatprep.subr.mxu0 0.0
    %432 = vmatpush1.msra.mxu0 %v424
    %433 = vmatprep.subr.mxu0 0.0
    %434 = vmatpush1.msra.mxu0 %v423
    %435 = vmatprep.subr.mxu0 0.0
    %436 = vmatpush1.msra.mxu0 %v422
    %437 = vmatprep.subr.mxu0 0.0
    %438 = vmatpush1.msra.mxu0 %v421
    %439 = vmatprep.subr.mxu0 0.0
    %440 = vmatpush1.msra.mxu0 %v420
    %441 = vmatprep.subr.mxu0 0.0
    %442 = vmatpush1.msra.mxu0 %v419
    %443 = vmatprep.subr.mxu0 0.0
    %444 = vmatpush1.msra.mxu0 %v418
    %445 = vmatprep.subr.mxu0 0.0
    %446 = vmatpush1.msra.mxu0 %v417
    %447 = vmatprep.subr.mxu0 0.0
    %448 = vmatpush1.msra.mxu0 %v416
    %449 = vmatprep.subr.mxu0 0.0
    %450 = vmatpush1.msra.mxu0 %v415
    %451 = vmatprep.subr.mxu0 0.0
    %452 = vmatpush1.msra.mxu0 %v414
    %453 = vmatprep.subr.mxu0 0.0
    %454 = vmatpush1.msra.mxu0 %v413
    %455 = vmatprep.subr.mxu0 0.0
    %456 = vmatpush1.msra.mxu0 %v412
    %457 = vmatprep.subr.mxu0 0.0
    %458 = vmatpush1.msra.mxu0 %v411
    %459 = vmatprep.subr.mxu0 0.0
    %460 = vmatpush2.msra.mxu0 0.0
    %461 = vmatprep.subr.mxu0 0.0
    %462 = vmatpush2.msra.mxu0 0.0
    %463 = vmatprep.subr.mxu0 0.0
    %464 = vmatpush2.msra.mxu0 0.0
    %465 = vmatprep.subr.mxu0 0.0
    %466 = vmatpush2.msra.mxu0 0.0
    %467 = vmatprep.subr.mxu0 0.0
    %468 = vmatpush2.msra.mxu0 0.0
    %469 = vmatprep.subr.mxu0 0.0
    %470 = vmatpush2.msra.mxu0 0.0
    %471 = vmatprep.subr.mxu0 0.0
    %472 = vmatpush2.msra.mxu0 0.0
    %473 = vmatprep.subr.mxu0 0.0
    %474 = vmatpush2.msra.mxu0 0.0
    %475 = vmatprep.subr.mxu0 0.0
    %476 = vmatpush2.msra.mxu0 0.0
    %477 = vmatprep.subr.mxu0 0.0
    %478 = vmatpush2.msra.mxu0 0.0
    %479 = vmatprep.subr.mxu0 0.0
    %480 = vmatpush2.msra.mxu0 0.0
    %481 = vmatprep.subr.mxu0 0.0
    %482 = vmatpush2.msra.mxu0 0.0
    %483 = vmatprep.subr.mxu0 0.0
    %484 = vmatpush2.msra.mxu0 0.0
    %485 = vmatprep.subr.mxu0 0.0
    %486 = vmatpush2.msra.mxu0 0.0
    %487 = vmatprep.subr.mxu0 0.0
    %488 = vmatpush2.msra.mxu0 0.0
    %489 = vmatprep.subr.mxu0 0.0
    %490 = vmatpush2.msra.mxu0 0.0
    %491 = vmatprep.mubr.f32.mxu0 0.0
    %492 = vmatmul.mubr.f32.gmra.mxu0 %v406
    %v493 = vpop.f32.mrf.mxu0
    %v494 = vadd.f32 0.0, %v493
    %v495 = vpop.f32.mrf.mxu0
    %496 = vmatprep.mubr.f32.mxu0 0.0
    %497 = vmatmul.mubr.f32.gmra.mxu0 %v407
    %v498 = vpop.f32.mrf.mxu0
    %v499 = vadd.f32 0.0, %v498
    %v500 = vpop.f32.mrf.mxu0
    %501 = vmatprep.mubr.f32.mxu0 0.0
    %502 = vmatmul.mubr.f32.gmra.mxu0 %v408
    %v503 = vpop.f32.mrf.mxu0
    %v504 = vadd.f32 0.0, %v503
    %v505 = vpop.f32.mrf.mxu0
    %506 = vmatprep.mubr.f32.mxu0 0.0
    %507 = vmatmul.mubr.f32.gmra.mxu0 %v409
    %v508 = vpop.f32.mrf.mxu0
    %v509 = vadd.f32 0.0, %v508
    %v510 = vpop.f32.mrf.mxu0
    %511 = vdwg.mxu0
    %512 = vmatprep.subr.mxu0 0.0
    %513 = vmatpush1.msra.mxu0 %v405
    %514 = vmatprep.subr.mxu0 0.0
    %515 = vmatpush1.msra.mxu0 %v404
    %516 = vmatprep.subr.mxu0 0.0
    %517 = vmatpush1.msra.mxu0 %v403
    %518 = vmatprep.subr.mxu0 0.0
    %519 = vmatpush1.msra.mxu0 %v402
    %520 = vmatprep.subr.mxu0 0.0
    %521 = vmatpush1.msra.mxu0 %v401
    %522 = vmatprep.subr.mxu0 0.0
    %523 = vmatpush1.msra.mxu0 %v400
    %524 = vmatprep.subr.mxu0 0.0
    %525 = vmatpush1.msra.mxu0 %v399
    %526 = vmatprep.subr.mxu0 0.0
    %527 = vmatpush1.msra.mxu0 %v398
    %528 = vmatprep.subr.mxu0 0.0
    %529 = vmatpush1.msra.mxu0 %v397
    %530 = vmatprep.subr.mxu0 0.0
    %531 = vmatpush1.msra.mxu0 %v396
    %532 = vmatprep.subr.mxu0 0.0
    %533 = vmatpush1.msra.mxu0 %v395
    %534 = vmatprep.subr.mxu0 0.0
    %535 = vmatpush1.msra.mxu0 %v394
    %536 = vmatprep.subr.mxu0 0.0
    %537 = vmatpush1.msra.mxu0 %v393
    %538 = vmatprep.subr.mxu0 0.0
    %539 = vmatpush1.msra.mxu0 %v392
    %540 = vmatprep.subr.mxu0 0.0
    %541 = vmatpush1.msra.mxu0 %v391
    %542 = vmatprep.subr.mxu0 0.0
    %543 = vmatpush1.msra.mxu0 %v390
    %544 = vmatprep.subr.mxu0 0.0
    %545 = vmatpush2.msra.mxu0 0.0
    %546 = vmatprep.subr.mxu0 0.0
    %547 = vmatpush2.msra.mxu0 0.0
    %548 = vmatprep.subr.mxu0 0.0
    %549 = vmatpush2.msra.mxu0 0.0
    %550 = vmatprep.subr.mxu0 0.0
    %551 = vmatpush2.msra.mxu0 0.0
    %552 = vmatprep.subr.mxu0 0.0
    %553 = vmatpush2.msra.mxu0 0.0
    %554 = vmatprep.subr.mxu0 0.0
    %555 = vmatpush2.msra.mxu0 0.0
    %556 = vmatprep.subr.mxu0 0.0
    %557 = vmatpush2.msra.mxu0 0.0
    %558 = vmatprep.subr.mxu0 0.0
    %559 = vmatpush2.msra.mxu0 0.0
    %560 = vmatprep.subr.mxu0 0.0
    %561 = vmatpush2.msra.mxu0 0.0
    %562 = vmatprep.subr.mxu0 0.0
    %563 = vmatpush2.msra.mxu0 0.0
    %564 = vmatprep.subr.mxu0 0.0
    %565 = vmatpush2.msra.mxu0 0.0
    %566 = vmatprep.subr.mxu0 0.0
    %567 = vmatpush2.msra.mxu0 0.0
    %568 = vmatprep.subr.mxu0 0.0
    %569 = vmatpush2.msra.mxu0 0.0
    %570 = vmatprep.subr.mxu0 0.0
    %571 = vmatpush2.msra.mxu0 0.0
    %572 = vmatprep.subr.mxu0 0.0
    %573 = vmatpush2.msra.mxu0 0.0
    %574 = vmatprep.subr.mxu0 0.0
    %575 = vmatpush2.msra.mxu0 0.0
    %576 = vmatprep.mubr.f32.mxu0 0.0
    %577 = vmatmul.mubr.f32.gmra.mxu0 %v385
    %v578 = vpop.f32.mrf.mxu0
    %v579 = vadd.f32 %v494, %v578
    %v580 = vpop.f32.mrf.mxu0
    %581 = vmatprep.mubr.f32.mxu0 0.0
    %582 = vmatmul.mubr.f32.gmra.mxu0 %v386
    %v583 = vpop.f32.mrf.mxu0
    %v584 = vadd.f32 %v499, %v583
    %v585 = vpop.f32.mrf.mxu0
    %586 = vmatprep.mubr.f32.mxu0 0.0
    %587 = vmatmul.mubr.f32.gmra.mxu0 %v387
    %v588 = vpop.f32.mrf.mxu0
    %v589 = vadd.f32 %v504, %v588
    %v590 = vpop.f32.mrf.mxu0
    %591 = vmatprep.mubr.f32.mxu0 0.0
    %592 = vmatmul.mubr.f32.gmra.mxu0 %v388
    %v593 = vpop.f32.mrf.mxu0
    %v594 = vadd.f32 %v509, %v593
    %v595 = vpop.f32.mrf.mxu0
    %596 = vdwg.mxu0
    %v597 = vld [vmem:[#allocation2 + $0x2] sm:$0xff]
    %v598 = vld [vmem:[#allocation2 + $0xa] sm:$0xff]
    %v599 = vld [vmem:[#allocation2 + $0x1a] sm:$0xff]
    %v600 = vld [vmem:[#allocation2 + $0x22] sm:$0xff]
    %s601 = scalar_lea.vmem [#allocation4], 640
    %v602 = vld [vmem:[%s601] sm:$0xff]
    %v603 = vld [vmem:[%s601 + $0x8] sm:$0xff]
    %v604 = vld [vmem:[%s601 + $0x10] sm:$0xff]
    %v605 = vld [vmem:[%s601 + $0x18] sm:$0xff]
    %v606 = vld [vmem:[%s601 + $0x20] sm:$0xff]
    %v607 = vld [vmem:[%s601 + $0x28] sm:$0xff]
    %v608 = vld [vmem:[%s601 + $0x30] sm:$0xff]
    %v609 = vld [vmem:[%s601 + $0x38] sm:$0xff]
    %v610 = vld [vmem:[%s601 + $0x40] sm:$0xff]
    %v611 = vld [vmem:[%s601 + $0x48] sm:$0xff]
    %v612 = vld [vmem:[%s601 + $0x50] sm:$0xff]
    %v613 = vld [vmem:[%s601 + $0x58] sm:$0xff]
    %v614 = vld [vmem:[%s601 + $0x60] sm:$0xff]
    %v615 = vld [vmem:[%s601 + $0x68] sm:$0xff]
    %v616 = vld [vmem:[%s601 + $0x70] sm:$0xff]
    %v617 = vld [vmem:[%s601 + $0x78] sm:$0xff]
    %618 = vmatprep.subr.mxu0 0.0
    %619 = vmatpush1.msra.mxu0 %v617
    %620 = vmatprep.subr.mxu0 0.0
    %621 = vmatpush1.msra.mxu0 %v616
    %622 = vmatprep.subr.mxu0 0.0
    %623 = vmatpush1.msra.mxu0 %v615
    %624 = vmatprep.subr.mxu0 0.0
    %625 = vmatpush1.msra.mxu0 %v614
    %626 = vmatprep.subr.mxu0 0.0
    %627 = vmatpush1.msra.mxu0 %v613
    %628 = vmatprep.subr.mxu0 0.0
    %629 = vmatpush1.msra.mxu0 %v612
    %630 = vmatprep.subr.mxu0 0.0
    %631 = vmatpush1.msra.mxu0 %v611
    %632 = vmatprep.subr.mxu0 0.0
    %633 = vmatpush1.msra.mxu0 %v610
    %634 = vmatprep.subr.mxu0 0.0
    %635 = vmatpush1.msra.mxu0 %v609
    %636 = vmatprep.subr.mxu0 0.0
    %637 = vmatpush1.msra.mxu0 %v608
    %638 = vmatprep.subr.mxu0 0.0
    %639 = vmatpush1.msra.mxu0 %v607
    %640 = vmatprep.subr.mxu0 0.0
    %641 = vmatpush1.msra.mxu0 %v606
    %642 = vmatprep.subr.mxu0 0.0
    %643 = vmatpush1.msra.mxu0 %v605
    %644 = vmatprep.subr.mxu0 0.0
    %645 = vmatpush1.msra.mxu0 %v604
    %646 = vmatprep.subr.mxu0 0.0
    %647 = vmatpush1.msra.mxu0 %v603
    %648 = vmatprep.subr.mxu0 0.0
    %649 = vmatpush1.msra.mxu0 %v602
    %650 = vmatprep.subr.mxu0 0.0
    %651 = vmatpush2.msra.mxu0 0.0
    %652 = vmatprep.subr.mxu0 0.0
    %653 = vmatpush2.msra.mxu0 0.0
    %654 = vmatprep.subr.mxu0 0.0
    %655 = vmatpush2.msra.mxu0 0.0
    %656 = vmatprep.subr.mxu0 0.0
    %657 = vmatpush2.msra.mxu0 0.0
    %658 = vmatprep.subr.mxu0 0.0
    %659 = vmatpush2.msra.mxu0 0.0
    %660 = vmatprep.subr.mxu0 0.0
    %661 = vmatpush2.msra.mxu0 0.0
    %662 = vmatprep.subr.mxu0 0.0
    %663 = vmatpush2.msra.mxu0 0.0
    %664 = vmatprep.subr.mxu0 0.0
    %665 = vmatpush2.msra.mxu0 0.0
    %666 = vmatprep.subr.mxu0 0.0
    %667 = vmatpush2.msra.mxu0 0.0
    %668 = vmatprep.subr.mxu0 0.0
    %669 = vmatpush2.msra.mxu0 0.0
    %670 = vmatprep.subr.mxu0 0.0
    %671 = vmatpush2.msra.mxu0 0.0
    %672 = vmatprep.subr.mxu0 0.0
    %673 = vmatpush2.msra.mxu0 0.0
    %674 = vmatprep.subr.mxu0 0.0
    %675 = vmatpush2.msra.mxu0 0.0
    %676 = vmatprep.subr.mxu0 0.0
    %677 = vmatpush2.msra.mxu0 0.0
    %678 = vmatprep.subr.mxu0 0.0
    %679 = vmatpush2.msra.mxu0 0.0
    %680 = vmatprep.subr.mxu0 0.0
    %681 = vmatpush2.msra.mxu0 0.0
    %682 = vmatprep.mubr.f32.mxu0 0.0
    %683 = vmatmul.mubr.f32.gmra.mxu0 %v597
    %v684 = vpop.f32.mrf.mxu0
    %v685 = vadd.f32 0.0, %v684
    %v686 = vpop.f32.mrf.mxu0
    %687 = vmatprep.mubr.f32.mxu0 0.0
    %688 = vmatmul.mubr.f32.gmra.mxu0 %v598
    %v689 = vpop.f32.mrf.mxu0
    %v690 = vadd.f32 0.0, %v689
    %v691 = vpop.f32.mrf.mxu0
    %692 = vmatprep.mubr.f32.mxu0 0.0
    %693 = vmatmul.mubr.f32.gmra.mxu0 %v599
    %v694 = vpop.f32.mrf.mxu0
    %v695 = vadd.f32 0.0, %v694
    %v696 = vpop.f32.mrf.mxu0
    %697 = vmatprep.mubr.f32.mxu0 0.0
    %698 = vmatmul.mubr.f32.gmra.mxu0 %v600
    %v699 = vpop.f32.mrf.mxu0
    %v700 = vadd.f32 0.0, %v699
    %v701 = vpop.f32.mrf.mxu0
    %702 = vdwg.mxu0
    %v703 = vadd.f32 %v579, %v685
    %v704 = vadd.f32 %v584, %v690
    %v705 = vadd.f32 %v589, %v695
    %v706 = vadd.f32 %v594, %v700
    %v707 = vld [vmem:[%s2 + $0x31] sm:$0x1]
    %v708 = vlaneseq
    %v709 = vshrl.u32 %v708, 7
    %v710 = vsub.s32 0, %v709
    %v711 = vrot.slane %v707, %v710
    %v712 = vadd.f32 %v703, %v711
    %v713 = vadd.f32 %v704, %v711
    %v714 = vadd.f32 %v705, %v711
    %v715 = vadd.f32 %v706, %v711
    %v716 = vmax.f32 %v712, 0.0
    %v717 = vmax.f32 %v713, 0.0
    %v718 = vmax.f32 %v714, 0.0
    %v719 = vmax.f32 %v715, 0.0
    %720 = vst [vmem:[#allocation2 + $0x1] sm:$0xff] %v716
    %721 = vst [vmem:[#allocation2 + $0x9] sm:$0xff] %v717
    %722 = vst [vmem:[#allocation2 + $0x19] sm:$0xff] %v718
    %723 = vst [vmem:[#allocation2 + $0x21] sm:$0xff] %v719
    %v724 = vld [vmem:[#allocation2] sm:$0xff]
    %v725 = vld [vmem:[#allocation2 + $0x8] sm:$0xff]
    %v726 = vld [vmem:[#allocation2 + $0x18] sm:$0xff]
    %v727 = vld [vmem:[#allocation2 + $0x20] sm:$0xff]
    %s728 = scalar_lea.vmem [#allocation4], 768
    %v729 = vld [vmem:[%s728] sm:$0xff]
    %v730 = vld [vmem:[%s728 + $0x8] sm:$0xff]
    %v731 = vld [vmem:[%s728 + $0x10] sm:$0xff]
    %v732 = vld [vmem:[%s728 + $0x18] sm:$0xff]
    %v733 = vld [vmem:[%s728 + $0x20] sm:$0xff]
    %v734 = vld [vmem:[%s728 + $0x28] sm:$0xff]
    %v735 = vld [vmem:[%s728 + $0x30] sm:$0xff]
    %v736 = vld [vmem:[%s728 + $0x38] sm:$0xff]
    %v737 = vld [vmem:[%s728 + $0x40] sm:$0xff]
    %v738 = vld [vmem:[%s728 + $0x48] sm:$0xff]
    %v739 = vld [vmem:[%s728 + $0x50] sm:$0xff]
    %v740 = vld [vmem:[%s728 + $0x58] sm:$0xff]
    %v741 = vld [vmem:[%s728 + $0x60] sm:$0xff]
    %v742 = vld [vmem:[%s728 + $0x68] sm:$0xff]
    %v743 = vld [vmem:[%s728 + $0x70] sm:$0xff]
    %v744 = vld [vmem:[%s728 + $0x78] sm:$0xff]
    %v745 = vld [vmem:[#allocation2 + $0x1] sm:$0xff]
    %v746 = vld [vmem:[#allocation2 + $0x9] sm:$0xff]
    %v747 = vld [vmem:[#allocation2 + $0x19] sm:$0xff]
    %v748 = vld [vmem:[#allocation2 + $0x21] sm:$0xff]
    %s749 = scalar_lea.vmem [#allocation4], 896
    %v750 = vld [vmem:[%s749] sm:$0xff]
    %v751 = vld [vmem:[%s749 + $0x8] sm:$0xff]
    %v752 = vld [vmem:[%s749 + $0x10] sm:$0xff]
    %v753 = vld [vmem:[%s749 + $0x18] sm:$0xff]
    %v754 = vld [vmem:[%s749 + $0x20] sm:$0xff]
    %v755 = vld [vmem:[%s749 + $0x28] sm:$0xff]
    %v756 = vld [vmem:[%s749 + $0x30] sm:$0xff]
    %v757 = vld [vmem:[%s749 + $0x38] sm:$0xff]
    %v758 = vld [vmem:[%s749 + $0x40] sm:$0xff]
    %v759 = vld [vmem:[%s749 + $0x48] sm:$0xff]
    %v760 = vld [vmem:[%s749 + $0x50] sm:$0xff]
    %v761 = vld [vmem:[%s749 + $0x58] sm:$0xff]
    %v762 = vld [vmem:[%s749 + $0x60] sm:$0xff]
    %v763 = vld [vmem:[%s749 + $0x68] sm:$0xff]
    %v764 = vld [vmem:[%s749 + $0x70] sm:$0xff]
    %v765 = vld [vmem:[%s749 + $0x78] sm:$0xff]
    %766 = vmatprep.subr.mxu0 0.0
    %767 = vmatpush1.msra.mxu0 %v765
    %768 = vmatprep.subr.mxu0 0.0
    %769 = vmatpush1.msra.mxu0 %v764
    %770 = vmatprep.subr.mxu0 0.0
    %771 = vmatpush1.msra.mxu0 %v763
    %772 = vmatprep.subr.mxu0 0.0
    %773 = vmatpush1.msra.mxu0 %v762
    %774 = vmatprep.subr.mxu0 0.0
    %775 = vmatpush1.msra.mxu0 %v761
    %776 = vmatprep.subr.mxu0 0.0
    %777 = vmatpush1.msra.mxu0 %v760
    %778 = vmatprep.subr.mxu0 0.0
    %779 = vmatpush1.msra.mxu0 %v759
    %780 = vmatprep.subr.mxu0 0.0
    %781 = vmatpush1.msra.mxu0 %v758
    %782 = vmatprep.subr.mxu0 0.0
    %783 = vmatpush1.msra.mxu0 %v757
    %784 = vmatprep.subr.mxu0 0.0
    %785 = vmatpush1.msra.mxu0 %v756
    %786 = vmatprep.subr.mxu0 0.0
    %787 = vmatpush1.msra.mxu0 %v755
    %788 = vmatprep.subr.mxu0 0.0
    %789 = vmatpush1.msra.mxu0 %v754
    %790 = vmatprep.subr.mxu0 0.0
    %791 = vmatpush1.msra.mxu0 %v753
    %792 = vmatprep.subr.mxu0 0.0
    %793 = vmatpush1.msra.mxu0 %v752
    %794 = vmatprep.subr.mxu0 0.0
    %795 = vmatpush1.msra.mxu0 %v751
    %796 = vmatprep.subr.mxu0 0.0
    %797 = vmatpush1.msra.mxu0 %v750
    %798 = vmatprep.subr.mxu0 0.0
    %799 = vmatpush2.msra.mxu0 0.0
    %800 = vmatprep.subr.mxu0 0.0
    %801 = vmatpush2.msra.mxu0 0.0
    %802 = vmatprep.subr.mxu0 0.0
    %803 = vmatpush2.msra.mxu0 0.0
    %804 = vmatprep.subr.mxu0 0.0
    %805 = vmatpush2.msra.mxu0 0.0
    %806 = vmatprep.subr.mxu0 0.0
    %807 = vmatpush2.msra.mxu0 0.0
    %808 = vmatprep.subr.mxu0 0.0
    %809 = vmatpush2.msra.mxu0 0.0
    %810 = vmatprep.subr.mxu0 0.0
    %811 = vmatpush2.msra.mxu0 0.0
    %812 = vmatprep.subr.mxu0 0.0
    %813 = vmatpush2.msra.mxu0 0.0
    %814 = vmatprep.subr.mxu0 0.0
    %815 = vmatpush2.msra.mxu0 0.0
    %816 = vmatprep.subr.mxu0 0.0
    %817 = vmatpush2.msra.mxu0 0.0
    %818 = vmatprep.subr.mxu0 0.0
    %819 = vmatpush2.msra.mxu0 0.0
    %820 = vmatprep.subr.mxu0 0.0
    %821 = vmatpush2.msra.mxu0 0.0
    %822 = vmatprep.subr.mxu0 0.0
    %823 = vmatpush2.msra.mxu0 0.0
    %824 = vmatprep.subr.mxu0 0.0
    %825 = vmatpush2.msra.mxu0 0.0
    %826 = vmatprep.subr.mxu0 0.0
    %827 = vmatpush2.msra.mxu0 0.0
    %828 = vmatprep.subr.mxu0 0.0
    %829 = vmatpush2.msra.mxu0 0.0
    %830 = vmatprep.mubr.f32.mxu0 0.0
    %831 = vmatmul.mubr.f32.gmra.mxu0 %v745
    %v832 = vpop.f32.mrf.mxu0
    %v833 = vadd.f32 0.0, %v832
    %v834 = vpop.f32.mrf.mxu0
    %835 = vmatprep.mubr.f32.mxu0 0.0
    %836 = vmatmul.mubr.f32.gmra.mxu0 %v746
    %v837 = vpop.f32.mrf.mxu0
    %v838 = vadd.f32 0.0, %v837
    %v839 = vpop.f32.mrf.mxu0
    %840 = vmatprep.mubr.f32.mxu0 0.0
    %841 = vmatmul.mubr.f32.gmra.mxu0 %v747
    %v842 = vpop.f32.mrf.mxu0
    %v843 = vadd.f32 0.0, %v842
    %v844 = vpop.f32.mrf.mxu0
    %845 = vmatprep.mubr.f32.mxu0 0.0
    %846 = vmatmul.mubr.f32.gmra.mxu0 %v748
    %v847 = vpop.f32.mrf.mxu0
    %v848 = vadd.f32 0.0, %v847
    %v849 = vpop.f32.mrf.mxu0
    %850 = vdwg.mxu0
    %851 = vmatprep.subr.mxu0 0.0
    %852 = vmatpush1.msra.mxu0 %v744
    %853 = vmatprep.subr.mxu0 0.0
    %854 = vmatpush1.msra.mxu0 %v743
    %855 = vmatprep.subr.mxu0 0.0
    %856 = vmatpush1.msra.mxu0 %v742
    %857 = vmatprep.subr.mxu0 0.0
    %858 = vmatpush1.msra.mxu0 %v741
    %859 = vmatprep.subr.mxu0 0.0
    %860 = vmatpush1.msra.mxu0 %v740
    %861 = vmatprep.subr.mxu0 0.0
    %862 = vmatpush1.msra.mxu0 %v739
    %863 = vmatprep.subr.mxu0 0.0
    %864 = vmatpush1.msra.mxu0 %v738
    %865 = vmatprep.subr.mxu0 0.0
    %866 = vmatpush1.msra.mxu0 %v737
    %867 = vmatprep.subr.mxu0 0.0
    %868 = vmatpush1.msra.mxu0 %v736
    %869 = vmatprep.subr.mxu0 0.0
    %870 = vmatpush1.msra.mxu0 %v735
    %871 = vmatprep.subr.mxu0 0.0
    %872 = vmatpush1.msra.mxu0 %v734
    %873 = vmatprep.subr.mxu0 0.0
    %874 = vmatpush1.msra.mxu0 %v733
    %875 = vmatprep.subr.mxu0 0.0
    %876 = vmatpush1.msra.mxu0 %v732
    %877 = vmatprep.subr.mxu0 0.0
    %878 = vmatpush1.msra.mxu0 %v731
    %879 = vmatprep.subr.mxu0 0.0
    %880 = vmatpush1.msra.mxu0 %v730
    %881 = vmatprep.subr.mxu0 0.0
    %882 = vmatpush1.msra.mxu0 %v729
    %883 = vmatprep.subr.mxu0 0.0
    %884 = vmatpush2.msra.mxu0 0.0
    %885 = vmatprep.subr.mxu0 0.0
    %886 = vmatpush2.msra.mxu0 0.0
    %887 = vmatprep.subr.mxu0 0.0
    %888 = vmatpush2.msra.mxu0 0.0
    %889 = vmatprep.subr.mxu0 0.0
    %890 = vmatpush2.msra.mxu0 0.0
    %891 = vmatprep.subr.mxu0 0.0
    %892 = vmatpush2.msra.mxu0 0.0
    %893 = vmatprep.subr.mxu0 0.0
    %894 = vmatpush2.msra.mxu0 0.0
    %895 = vmatprep.subr.mxu0 0.0
    %896 = vmatpush2.msra.mxu0 0.0
    %897 = vmatprep.subr.mxu0 0.0
    %898 = vmatpush2.msra.mxu0 0.0
    %899 = vmatprep.subr.mxu0 0.0
    %900 = vmatpush2.msra.mxu0 0.0
    %901 = vmatprep.subr.mxu0 0.0
    %902 = vmatpush2.msra.mxu0 0.0
    %903 = vmatprep.subr.mxu0 0.0
    %904 = vmatpush2.msra.mxu0 0.0
    %905 = vmatprep.subr.mxu0 0.0
    %906 = vmatpush2.msra.mxu0 0.0
    %907 = vmatprep.subr.mxu0 0.0
    %908 = vmatpush2.msra.mxu0 0.0
    %909 = vmatprep.subr.mxu0 0.0
    %910 = vmatpush2.msra.mxu0 0.0
    %911 = vmatprep.subr.mxu0 0.0
    %912 = vmatpush2.msra.mxu0 0.0
    %913 = vmatprep.subr.mxu0 0.0
    %914 = vmatpush2.msra.mxu0 0.0
    %915 = vmatprep.mubr.f32.mxu0 0.0
    %916 = vmatmul.mubr.f32.gmra.mxu0 %v724
    %v917 = vpop.f32.mrf.mxu0
    %v918 = vadd.f32 %v833, %v917
    %v919 = vpop.f32.mrf.mxu0
    %920 = vmatprep.mubr.f32.mxu0 0.0
    %921 = vmatmul.mubr.f32.gmra.mxu0 %v725
    %v922 = vpop.f32.mrf.mxu0
    %v923 = vadd.f32 %v838, %v922
    %v924 = vpop.f32.mrf.mxu0
    %925 = vmatprep.mubr.f32.mxu0 0.0
    %926 = vmatmul.mubr.f32.gmra.mxu0 %v726
    %v927 = vpop.f32.mrf.mxu0
    %v928 = vadd.f32 %v843, %v927
    %v929 = vpop.f32.mrf.mxu0
    %930 = vmatprep.mubr.f32.mxu0 0.0
    %931 = vmatmul.mubr.f32.gmra.mxu0 %v727
    %v932 = vpop.f32.mrf.mxu0
    %v933 = vadd.f32 %v848, %v932
    %v934 = vpop.f32.mrf.mxu0
    %935 = vdwg.mxu0
    %v936 = vld [vmem:[#allocation2 + $0x2] sm:$0xff]
    %v937 = vld [vmem:[#allocation2 + $0xa] sm:$0xff]
    %v938 = vld [vmem:[#allocation2 + $0x1a] sm:$0xff]
    %v939 = vld [vmem:[#allocation2 + $0x22] sm:$0xff]
    %s940 = scalar_lea.vmem [#allocation4], 1024
    %v941 = vld [vmem:[%s940] sm:$0xff]
    %v942 = vld [vmem:[%s940 + $0x8] sm:$0xff]
    %v943 = vld [vmem:[%s940 + $0x10] sm:$0xff]
    %v944 = vld [vmem:[%s940 + $0x18] sm:$0xff]
    %v945 = vld [vmem:[%s940 + $0x20] sm:$0xff]
    %v946 = vld [vmem:[%s940 + $0x28] sm:$0xff]
    %v947 = vld [vmem:[%s940 + $0x30] sm:$0xff]
    %v948 = vld [vmem:[%s940 + $0x38] sm:$0xff]
    %v949 = vld [vmem:[%s940 + $0x40] sm:$0xff]
    %v950 = vld [vmem:[%s940 + $0x48] sm:$0xff]
    %v951 = vld [vmem:[%s940 + $0x50] sm:$0xff]
    %v952 = vld [vmem:[%s940 + $0x58] sm:$0xff]
    %v953 = vld [vmem:[%s940 + $0x60] sm:$0xff]
    %v954 = vld [vmem:[%s940 + $0x68] sm:$0xff]
    %v955 = vld [vmem:[%s940 + $0x70] sm:$0xff]
    %v956 = vld [vmem:[%s940 + $0x78] sm:$0xff]
    %957 = vmatprep.subr.mxu0 0.0
    %958 = vmatpush1.msra.mxu0 %v956
    %959 = vmatprep.subr.mxu0 0.0
    %960 = vmatpush1.msra.mxu0 %v955
    %961 = vmatprep.subr.mxu0 0.0
    %962 = vmatpush1.msra.mxu0 %v954
    %963 = vmatprep.subr.mxu0 0.0
    %964 = vmatpush1.msra.mxu0 %v953
    %965 = vmatprep.subr.mxu0 0.0
    %966 = vmatpush1.msra.mxu0 %v952
    %967 = vmatprep.subr.mxu0 0.0
    %968 = vmatpush1.msra.mxu0 %v951
    %969 = vmatprep.subr.mxu0 0.0
    %970 = vmatpush1.msra.mxu0 %v950
    %971 = vmatprep.subr.mxu0 0.0
    %972 = vmatpush1.msra.mxu0 %v949
    %973 = vmatprep.subr.mxu0 0.0
    %974 = vmatpush1.msra.mxu0 %v948
    %975 = vmatprep.subr.mxu0 0.0
    %976 = vmatpush1.msra.mxu0 %v947
    %977 = vmatprep.subr.mxu0 0.0
    %978 = vmatpush1.msra.mxu0 %v946
    %979 = vmatprep.subr.mxu0 0.0
    %980 = vmatpush1.msra.mxu0 %v945
    %981 = vmatprep.subr.mxu0 0.0
    %982 = vmatpush1.msra.mxu0 %v944
    %983 = vmatprep.subr.mxu0 0.0
    %984 = vmatpush1.msra.mxu0 %v943
    %985 = vmatprep.subr.mxu0 0.0
    %986 = vmatpush1.msra.mxu0 %v942
    %987 = vmatprep.subr.mxu0 0.0
    %988 = vmatpush1.msra.mxu0 %v941
    %989 = vmatprep.subr.mxu0 0.0
    %990 = vmatpush2.msra.mxu0 0.0
    %991 = vmatprep.subr.mxu0 0.0
    %992 = vmatpush2.msra.mxu0 0.0
    %993 = vmatprep.subr.mxu0 0.0
    %994 = vmatpush2.msra.mxu0 0.0
    %995 = vmatprep.subr.mxu0 0.0
    %996 = vmatpush2.msra.mxu0 0.0
    %997 = vmatprep.subr.mxu0 0.0
    %998 = vmatpush2.msra.mxu0 0.0
    %999 = vmatprep.subr.mxu0 0.0
    %1000 = vmatpush2.msra.mxu0 0.0
    %1001 = vmatprep.subr.mxu0 0.0
    %1002 = vmatpush2.msra.mxu0 0.0
    %1003 = vmatprep.subr.mxu0 0.0
    %1004 = vmatpush2.msra.mxu0 0.0
    %1005 = vmatprep.subr.mxu0 0.0
    %1006 = vmatpush2.msra.mxu0 0.0
    %1007 = vmatprep.subr.mxu0 0.0
    %1008 = vmatpush2.msra.mxu0 0.0
    %1009 = vmatprep.subr.mxu0 0.0
    %1010 = vmatpush2.msra.mxu0 0.0
    %1011 = vmatprep.subr.mxu0 0.0
    %1012 = vmatpush2.msra.mxu0 0.0
    %1013 = vmatprep.subr.mxu0 0.0
    %1014 = vmatpush2.msra.mxu0 0.0
    %1015 = vmatprep.subr.mxu0 0.0
    %1016 = vmatpush2.msra.mxu0 0.0
    %1017 = vmatprep.subr.mxu0 0.0
    %1018 = vmatpush2.msra.mxu0 0.0
    %1019 = vmatprep.subr.mxu0 0.0
    %1020 = vmatpush2.msra.mxu0 0.0
    %1021 = vmatprep.mubr.f32.mxu0 0.0
    %1022 = vmatmul.mubr.f32.gmra.mxu0 %v936
    %v1023 = vpop.f32.mrf.mxu0
    %v1024 = vadd.f32 0.0, %v1023
    %v1025 = vpop.f32.mrf.mxu0
    %1026 = vmatprep.mubr.f32.mxu0 0.0
    %1027 = vmatmul.mubr.f32.gmra.mxu0 %v937
    %v1028 = vpop.f32.mrf.mxu0
    %v1029 = vadd.f32 0.0, %v1028
    %v1030 = vpop.f32.mrf.mxu0
    %1031 = vmatprep.mubr.f32.mxu0 0.0
    %1032 = vmatmul.mubr.f32.gmra.mxu0 %v938
    %v1033 = vpop.f32.mrf.mxu0
    %v1034 = vadd.f32 0.0, %v1033
    %v1035 = vpop.f32.mrf.mxu0
    %1036 = vmatprep.mubr.f32.mxu0 0.0
    %1037 = vmatmul.mubr.f32.gmra.mxu0 %v939
    %v1038 = vpop.f32.mrf.mxu0
    %v1039 = vadd.f32 0.0, %v1038
    %v1040 = vpop.f32.mrf.mxu0
    %1041 = vdwg.mxu0
    %v1042 = vadd.f32 %v918, %v1024
    %v1043 = vadd.f32 %v923, %v1029
    %v1044 = vadd.f32 %v928, %v1034
    %v1045 = vadd.f32 %v933, %v1039
    %v1046 = vld [vmem:[%s2 + $0x32] sm:$0x1]
    %v1047 = vlaneseq
    %v1048 = vshrl.u32 %v1047, 7
    %v1049 = vsub.s32 0, %v1048
    %v1050 = vrot.slane %v1046, %v1049
    %v1051 = vadd.f32 %v1042, %v1050
    %v1052 = vadd.f32 %v1043, %v1050
    %v1053 = vadd.f32 %v1044, %v1050
    %v1054 = vadd.f32 %v1045, %v1050
    %v1055 = vadd.f32 %v1051, %v377
    %v1056 = vadd.f32 %v1052, %v378
    %v1057 = vadd.f32 %v1053, %v379
    %v1058 = vadd.f32 %v1054, %v380
    %v1059 = vmax.f32 %v1055, 0.0
    %v1060 = vmax.f32 %v1056, 0.0
    %v1061 = vmax.f32 %v1057, 0.0
    %v1062 = vmax.f32 %v1058, 0.0
    %1063 = vst [vmem:[#allocation2 + $0x1] sm:$0xff] %v1059
    %1064 = vst [vmem:[#allocation2 + $0x9] sm:$0xff] %v1060
    %1065 = vst [vmem:[#allocation2 + $0x19] sm:$0xff] %v1061
    %1066 = vst [vmem:[#allocation2 + $0x21] sm:$0xff] %v1062
    %v1067 = vld [vmem:[%s2] sm:$0xff]
    %v1068 = vld [vmem:[%s2 + $0x8] sm:$0xff]
    %v1069 = vld [vmem:[%s2 + $0x10] sm:$0xff]
    %v1070 = vld [vmem:[%s2 + $0x18] sm:$0xff]
    %v1071 = vld [vmem:[%s2 + $0x20] sm:$0xff]
    %v1072 = vld [vmem:[%s2 + $0x28] sm:$0xff]
    %v1073 = vld [vmem:[#allocation2] sm:$0xff]
    %v1074 = vld [vmem:[#allocation2 + $0x8] sm:$0xff]
    %v1075 = vld [vmem:[#allocation2 + $0x10] sm:$0xf]
    %v1076 = vld [vmem:[#allocation2 + $0x18] sm:$0xff]
    %v1077 = vld [vmem:[#allocation2 + $0x20] sm:$0xff]
    %v1078 = vld [vmem:[#allocation2 + $0x28] sm:$0xf]
    %v1085 = vcombine.high %v1073, %v1073
    %v1086 = vcombine.high %v1074, %v1074
    %v1087 = vcombine.high %v1076, %v1076
    %v1088 = vcombine.high %v1077, %v1077
    %v1089 = vcombine.low %v1073, %v1085
    %v1090 = vcombine.low %v1074, %v1086
    %v1091 = vcombine.low %v1075, %v1076
    %v1092 = vcombine.low %v1087, %v1077
    %v1093 = vcombine.low %v1088, %v1078
    %vm1099 = vcmask 326656
    %v1101 = vsel %vm1099, %v1067, 0
    %v1104 = vsel %vm1099, %v1068, 0
    %v1107 = vsel %vm1099, %v1069, 0
    %v1110 = vsel %vm1099, %v1070, 0
    %v1113 = vsel %vm1099, %v1071, 0
    %v1116 = vsel %vm1099, %v1072, 0
    %1118 = vmatprep.subr.mxu0 0.0
    %1119 = vmatpush1.msra.mxu0 0.0
    %1120 = vmatprep.subr.mxu0 0.0
    %1121 = vmatpush1.msra.mxu0 0.0
    %1122 = vmatprep.subr.mxu0 0.0
    %1123 = vmatpush1.msra.mxu0 0.0
    %1124 = vmatprep.subr.mxu0 0.0
    %1125 = vmatpush1.msra.mxu0 0.0
    %1126 = vmatprep.subr.mxu0 0.0
    %1127 = vmatpush1.msra.mxu0 0.0
    %1128 = vmatprep.subr.mxu0 0.0
    %1129 = vmatpush1.msra.mxu0 0.0
    %1130 = vmatprep.subr.mxu0 0.0
    %1131 = vmatpush1.msra.mxu0 0.0
    %1132 = vmatprep.subr.mxu0 0.0
    %1133 = vmatpush1.msra.mxu0 0.0
    %1134 = vmatprep.subr.mxu0 0.0
    %1135 = vmatpush1.msra.mxu0 0.0
    %1136 = vmatprep.subr.mxu0 0.0
    %1137 = vmatpush1.msra.mxu0 0.0
    %1138 = vmatprep.subr.mxu0 0.0
    %1139 = vmatpush1.msra.mxu0 0.0
    %1140 = vmatprep.subr.mxu0 0.0
    %1141 = vmatpush1.msra.mxu0 %v1093
    %1142 = vmatprep.subr.mxu0 0.0
    %1143 = vmatpush1.msra.mxu0 %v1092
    %1144 = vmatprep.subr.mxu0 0.0
    %1145 = vmatpush1.msra.mxu0 %v1091
    %1146 = vmatprep.subr.mxu0 0.0
    %1147 = vmatpush1.msra.mxu0 %v1090
    %1148 = vmatprep.subr.mxu0 0.0
    %1149 = vmatpush1.msra.mxu0 %v1089
    %1150 = vmatprep.subr.mxu0 0.0
    %1151 = vmatpush2.msra.mxu0 0.0
    %1152 = vmatprep.subr.mxu0 0.0
    %1153 = vmatpush2.msra.mxu0 0.0
    %1154 = vmatprep.subr.mxu0 0.0
    %1155 = vmatpush2.msra.mxu0 0.0
    %1156 = vmatprep.subr.mxu0 0.0
    %1157 = vmatpush2.msra.mxu0 0.0
    %1158 = vmatprep.subr.mxu0 0.0
    %1159 = vmatpush2.msra.mxu0 0.0
    %1160 = vmatprep.subr.mxu0 0.0
    %1161 = vmatpush2.msra.mxu0 0.0
    %1162 = vmatprep.subr.mxu0 0.0
    %1163 = vmatpush2.msra.mxu0 0.0
    %1164 = vmatprep.subr.mxu0 0.0
    %1165 = vmatpush2.msra.mxu0 0.0
    %1166 = vmatprep.subr.mxu0 0.0
    %1167 = vmatpush2.msra.mxu0 0.0
    %1168 = vmatprep.subr.mxu0 0.0
    %1169 = vmatpush2.msra.mxu0 0.0
    %1170 = vmatprep.subr.mxu0 0.0
    %1171 = vmatpush2.msra.mxu0 0.0
    %1172 = vmatprep.subr.mxu0 0.0
    %1173 = vmatpush2.msra.mxu0 0.0
    %1174 = vmatprep.subr.mxu0 0.0
    %1175 = vmatpush2.msra.mxu0 0.0
    %1176 = vmatprep.subr.mxu0 0.0
    %1177 = vmatpush2.msra.mxu0 0.0
    %1178 = vmatprep.subr.mxu0 0.0
    %1179 = vmatpush2.msra.mxu0 0.0
    %1180 = vmatprep.subr.mxu0 0.0
    %1181 = vmatpush2.msra.mxu0 0.0
    %1182 = vmatprep.mubr.f32.mxu0 0.0
    %1183 = vmatmul.mubr.f32.gmra.mxu0 %v1101
    %v1184 = vpop.f32.mrf.mxu0
    %v1185 = vadd.f32 0.0, %v1184
    %v1186 = vpop.f32.mrf.mxu0
    %1187 = vmatprep.mubr.f32.mxu0 0.0
    %1188 = vmatmul.mubr.f32.gmra.mxu0 %v1104
    %v1189 = vpop.f32.mrf.mxu0
    %v1190 = vadd.f32 0.0, %v1189
    %v1191 = vpop.f32.mrf.mxu0
    %1192 = vmatprep.mubr.f32.mxu0 0.0
    %1193 = vmatmul.mubr.f32.gmra.mxu0 %v1107
    %v1194 = vpop.f32.mrf.mxu0
    %v1195 = vadd.f32 0.0, %v1194
    %v1196 = vpop.f32.mrf.mxu0
    %1197 = vmatprep.mubr.f32.mxu0 0.0
    %1198 = vmatmul.mubr.f32.gmra.mxu0 %v1110
    %v1199 = vpop.f32.mrf.mxu0
    %v1200 = vadd.f32 0.0, %v1199
    %v1201 = vpop.f32.mrf.mxu0
    %1202 = vmatprep.mubr.f32.mxu0 0.0
    %1203 = vmatmul.mubr.f32.gmra.mxu0 %v1113
    %v1204 = vpop.f32.mrf.mxu0
    %v1205 = vadd.f32 0.0, %v1204
    %v1206 = vpop.f32.mrf.mxu0
    %1207 = vmatprep.mubr.f32.mxu0 0.0
    %1208 = vmatmul.mubr.f32.gmra.mxu0 %v1116
    %v1209 = vpop.f32.mrf.mxu0
    %v1210 = vadd.f32 0.0, %v1209
    %v1211 = vpop.f32.mrf.mxu0
    %1212 = vdwg.mxu0
    %s1213 = scalar_lea.vmem [#allocation4], 1152
    %v1214 = vld [vmem:[%s1213] sm:$0xff]
    %v1215 = vld [vmem:[%s1213 + $0x8] sm:$0xff]
    %v1216 = vld [vmem:[%s1213 + $0x10] sm:$0xff]
    %v1217 = vld [vmem:[%s1213 + $0x18] sm:$0xff]
    %v1218 = vld [vmem:[%s1213 + $0x20] sm:$0xff]
    %v1219 = vld [vmem:[%s1213 + $0x28] sm:$0xff]
    %v1220 = vld [vmem:[%s1213 + $0x30] sm:$0xff]
    %v1221 = vld [vmem:[%s1213 + $0x38] sm:$0xff]
    %v1222 = vld [vmem:[%s1213 + $0x40] sm:$0xff]
    %v1223 = vld [vmem:[%s1213 + $0x48] sm:$0xff]
    %v1224 = vld [vmem:[%s1213 + $0x50] sm:$0xff]
    %v1225 = vld [vmem:[%s1213 + $0x58] sm:$0xff]
    %v1226 = vld [vmem:[%s1213 + $0x60] sm:$0xff]
    %v1227 = vld [vmem:[%s1213 + $0x68] sm:$0xff]
    %v1228 = vld [vmem:[%s1213 + $0x70] sm:$0xff]
    %v1229 = vld [vmem:[%s1213 + $0x78] sm:$0xff]
    %v1230 = vld [vmem:[%s2 + $0x33] sm:$0x1]
    %v1231 = vlaneseq
    %v1232 = vshrl.u32 %v1231, 7
    %v1233 = vsub.s32 0, %v1232
    %v1234 = vrot.slane %v1230, %v1233
    %1235 = vmatprep.subr.mxu0 0.0
    %1236 = vmatpush1.msra.mxu0 %v1229
    %1237 = vmatprep.subr.mxu0 0.0
    %1238 = vmatpush1.msra.mxu0 %v1228
    %1239 = vmatprep.subr.mxu0 0.0
    %1240 = vmatpush1.msra.mxu0 %v1227
    %1241 = vmatprep.subr.mxu0 0.0
    %1242 = vmatpush1.msra.mxu0 %v1226
    %1243 = vmatprep.subr.mxu0 0.0
    %1244 = vmatpush1.msra.mxu0 %v1225
    %1245 = vmatprep.subr.mxu0 0.0
    %1246 = vmatpush1.msra.mxu0 %v1224
    %1247 = vmatprep.subr.mxu0 0.0
    %1248 = vmatpush1.msra.mxu0 %v1223
    %1249 = vmatprep.subr.mxu0 0.0
    %1250 = vmatpush1.msra.mxu0 %v1222
    %1251 = vmatprep.subr.mxu0 0.0
    %1252 = vmatpush1.msra.mxu0 %v1221
    %1253 = vmatprep.subr.mxu0 0.0
    %1254 = vmatpush1.msra.mxu0 %v1220
    %1255 = vmatprep.subr.mxu0 0.0
    %1256 = vmatpush1.msra.mxu0 %v1219
    %1257 = vmatprep.subr.mxu0 0.0
    %1258 = vmatpush1.msra.mxu0 %v1218
    %1259 = vmatprep.subr.mxu0 0.0
    %1260 = vmatpush1.msra.mxu0 %v1217
    %1261 = vmatprep.subr.mxu0 0.0
    %1262 = vmatpush1.msra.mxu0 %v1216
    %1263 = vmatprep.subr.mxu0 0.0
    %1264 = vmatpush1.msra.mxu0 %v1215
    %1265 = vmatprep.subr.mxu0 0.0
    %1266 = vmatpush1.msra.mxu0 %v1214
    %1267 = vmatprep.subr.mxu0 0.0
    %1268 = vmatpush2.msra.mxu0 0.0
    %1269 = vmatprep.subr.mxu0 0.0
    %1270 = vmatpush2.msra.mxu0 0.0
    %1271 = vmatprep.subr.mxu0 0.0
    %1272 = vmatpush2.msra.mxu0 0.0
    %1273 = vmatprep.subr.mxu0 0.0
    %1274 = vmatpush2.msra.mxu0 0.0
    %1275 = vmatprep.subr.mxu0 0.0
    %1276 = vmatpush2.msra.mxu0 0.0
    %1277 = vmatprep.subr.mxu0 0.0
    %1278 = vmatpush2.msra.mxu0 0.0
    %1279 = vmatprep.subr.mxu0 0.0
    %1280 = vmatpush2.msra.mxu0 0.0
    %1281 = vmatprep.subr.mxu0 0.0
    %1282 = vmatpush2.msra.mxu0 0.0
    %1283 = vmatprep.subr.mxu0 0.0
    %1284 = vmatpush2.msra.mxu0 0.0
    %1285 = vmatprep.subr.mxu0 0.0
    %1286 = vmatpush2.msra.mxu0 0.0
    %1287 = vmatprep.subr.mxu0 0.0
    %1288 = vmatpush2.msra.mxu0 0.0
    %1289 = vmatprep.subr.mxu0 0.0
    %1290 = vmatpush2.msra.mxu0 0.0
    %1291 = vmatprep.subr.mxu0 0.0
    %1292 = vmatpush2.msra.mxu0 0.0
    %1293 = vmatprep.subr.mxu0 0.0
    %1294 = vmatpush2.msra.mxu0 0.0
    %1295 = vmatprep.subr.mxu0 0.0
    %1296 = vmatpush2.msra.mxu0 0.0
    %1297 = vmatprep.subr.mxu0 0.0
    %1298 = vmatpush2.msra.mxu0 0.0
    %1299 = vmatprep.mubr.f32.mxu0 0.0
    %1300 = vmatmul.mubr.f32.gmra.mxu0 %v1195
    %v1301 = vpop.f32.mrf.mxu0
    %v1302 = vadd.f32 %v1234, %v1301
    %v1303 = vpop.f32.mrf.mxu0
    %1304 = vmatprep.mubr.f32.mxu0 0.0
    %1305 = vmatmul.mubr.f32.gmra.mxu0 %v1200
    %v1306 = vpop.f32.mrf.mxu0
    %v1307 = vadd.f32 %v1234, %v1306
    %v1308 = vpop.f32.mrf.mxu0
    %1309 = vdwg.mxu0
    %s1310 = scalar_lea.vmem [#allocation4], 1280
    %v1311 = vld [vmem:[%s1310] sm:$0xff]
    %v1312 = vld [vmem:[%s1310 + $0x8] sm:$0xff]
    %v1313 = vld [vmem:[%s1310 + $0x10] sm:$0xff]
    %v1314 = vld [vmem:[%s1310 + $0x18] sm:$0xff]
    %v1315 = vld [vmem:[%s1310 + $0x20] sm:$0xff]
    %v1316 = vld [vmem:[%s1310 + $0x28] sm:$0xff]
    %v1317 = vld [vmem:[%s1310 + $0x30] sm:$0xff]
    %v1318 = vld [vmem:[%s1310 + $0x38] sm:$0xff]
    %v1319 = vld [vmem:[%s1310 + $0x40] sm:$0xff]
    %v1320 = vld [vmem:[%s1310 + $0x48] sm:$0xff]
    %v1321 = vld [vmem:[%s1310 + $0x50] sm:$0xff]
    %v1322 = vld [vmem:[%s1310 + $0x58] sm:$0xff]
    %v1323 = vld [vmem:[%s1310 + $0x60] sm:$0xff]
    %v1324 = vld [vmem:[%s1310 + $0x68] sm:$0xff]
    %v1325 = vld [vmem:[%s1310 + $0x70] sm:$0xff]
    %v1326 = vld [vmem:[%s1310 + $0x78] sm:$0xff]
    %s1327 = scalar_lea.vmem [#allocation4], 1408
    %v1328 = vld [vmem:[%s1327] sm:$0xff]
    %v1329 = vld [vmem:[%s1327 + $0x8] sm:$0xff]
    %v1330 = vld [vmem:[%s1327 + $0x10] sm:$0xff]
    %v1331 = vld [vmem:[%s1327 + $0x18] sm:$0xff]
    %v1332 = vld [vmem:[%s1327 + $0x20] sm:$0xff]
    %v1333 = vld [vmem:[%s1327 + $0x28] sm:$0xff]
    %v1334 = vld [vmem:[%s1327 + $0x30] sm:$0xff]
    %v1335 = vld [vmem:[%s1327 + $0x38] sm:$0xff]
    %v1336 = vld [vmem:[%s1327 + $0x40] sm:$0xff]
    %v1337 = vld [vmem:[%s1327 + $0x48] sm:$0xff]
    %v1338 = vld [vmem:[%s1327 + $0x50] sm:$0xff]
    %v1339 = vld [vmem:[%s1327 + $0x58] sm:$0xff]
    %v1340 = vld [vmem:[%s1327 + $0x60] sm:$0xff]
    %v1341 = vld [vmem:[%s1327 + $0x68] sm:$0xff]
    %v1342 = vld [vmem:[%s1327 + $0x70] sm:$0xff]
    %v1343 = vld [vmem:[%s1327 + $0x78] sm:$0xff]
    %1344 = vmatprep.subr.mxu0 0.0
    %1345 = vmatpush1.msra.mxu0 %v1343
    %1346 = vmatprep.subr.mxu0 0.0
    %1347 = vmatpush1.msra.mxu0 %v1342
    %1348 = vmatprep.subr.mxu0 0.0
    %1349 = vmatpush1.msra.mxu0 %v1341
    %1350 = vmatprep.subr.mxu0 0.0
    %1351 = vmatpush1.msra.mxu0 %v1340
    %1352 = vmatprep.subr.mxu0 0.0
    %1353 = vmatpush1.msra.mxu0 %v1339
    %1354 = vmatprep.subr.mxu0 0.0
    %1355 = vmatpush1.msra.mxu0 %v1338
    %1356 = vmatprep.subr.mxu0 0.0
    %1357 = vmatpush1.msra.mxu0 %v1337
    %1358 = vmatprep.subr.mxu0 0.0
    %1359 = vmatpush1.msra.mxu0 %v1336
    %1360 = vmatprep.subr.mxu0 0.0
    %1361 = vmatpush1.msra.mxu0 %v1335
    %1362 = vmatprep.subr.mxu0 0.0
    %1363 = vmatpush1.msra.mxu0 %v1334
    %1364 = vmatprep.subr.mxu0 0.0
    %1365 = vmatpush1.msra.mxu0 %v1333
    %1366 = vmatprep.subr.mxu0 0.0
    %1367 = vmatpush1.msra.mxu0 %v1332
    %1368 = vmatprep.subr.mxu0 0.0
    %1369 = vmatpush1.msra.mxu0 %v1331
    %1370 = vmatprep.subr.mxu0 0.0
    %1371 = vmatpush1.msra.mxu0 %v1330
    %1372 = vmatprep.subr.mxu0 0.0
    %1373 = vmatpush1.msra.mxu0 %v1329
    %1374 = vmatprep.subr.mxu0 0.0
    %1375 = vmatpush1.msra.mxu0 %v1328
    %1376 = vmatprep.subr.mxu0 0.0
    %1377 = vmatpush2.msra.mxu0 0.0
    %1378 = vmatprep.subr.mxu0 0.0
    %1379 = vmatpush2.msra.mxu0 0.0
    %1380 = vmatprep.subr.mxu0 0.0
    %1381 = vmatpush2.msra.mxu0 0.0
    %1382 = vmatprep.subr.mxu0 0.0
    %1383 = vmatpush2.msra.mxu0 0.0
    %1384 = vmatprep.subr.mxu0 0.0
    %1385 = vmatpush2.msra.mxu0 0.0
    %1386 = vmatprep.subr.mxu0 0.0
    %1387 = vmatpush2.msra.mxu0 0.0
    %1388 = vmatprep.subr.mxu0 0.0
    %1389 = vmatpush2.msra.mxu0 0.0
    %1390 = vmatprep.subr.mxu0 0.0
    %1391 = vmatpush2.msra.mxu0 0.0
    %1392 = vmatprep.subr.mxu0 0.0
    %1393 = vmatpush2.msra.mxu0 0.0
    %1394 = vmatprep.subr.mxu0 0.0
    %1395 = vmatpush2.msra.mxu0 0.0
    %1396 = vmatprep.subr.mxu0 0.0
    %1397 = vmatpush2.msra.mxu0 0.0
    %1398 = vmatprep.subr.mxu0 0.0
    %1399 = vmatpush2.msra.mxu0 0.0
    %1400 = vmatprep.subr.mxu0 0.0
    %1401 = vmatpush2.msra.mxu0 0.0
    %1402 = vmatprep.subr.mxu0 0.0
    %1403 = vmatpush2.msra.mxu0 0.0
    %1404 = vmatprep.subr.mxu0 0.0
    %1405 = vmatpush2.msra.mxu0 0.0
    %1406 = vmatprep.subr.mxu0 0.0
    %1407 = vmatpush2.msra.mxu0 0.0
    %1408 = vmatprep.mubr.f32.mxu0 0.0
    %1409 = vmatmul.mubr.f32.gmra.mxu0 %v1195
    %v1410 = vpop.f32.mrf.mxu0
    %v1411 = vadd.f32 0.0, %v1410
    %v1412 = vpop.f32.mrf.mxu0
    %1413 = vmatprep.mubr.f32.mxu0 0.0
    %1414 = vmatmul.mubr.f32.gmra.mxu0 %v1200
    %v1415 = vpop.f32.mrf.mxu0
    %v1416 = vadd.f32 0.0, %v1415
    %v1417 = vpop.f32.mrf.mxu0
    %1418 = vdwg.mxu0
    %1419 = vmatprep.subr.mxu0 0.0
    %1420 = vmatpush1.msra.mxu0 %v1326
    %1421 = vmatprep.subr.mxu0 0.0
    %1422 = vmatpush1.msra.mxu0 %v1325
    %1423 = vmatprep.subr.mxu0 0.0
    %1424 = vmatpush1.msra.mxu0 %v1324
    %1425 = vmatprep.subr.mxu0 0.0
    %1426 = vmatpush1.msra.mxu0 %v1323
    %1427 = vmatprep.subr.mxu0 0.0
    %1428 = vmatpush1.msra.mxu0 %v1322
    %1429 = vmatprep.subr.mxu0 0.0
    %1430 = vmatpush1.msra.mxu0 %v1321
    %1431 = vmatprep.subr.mxu0 0.0
    %1432 = vmatpush1.msra.mxu0 %v1320
    %1433 = vmatprep.subr.mxu0 0.0
    %1434 = vmatpush1.msra.mxu0 %v1319
    %1435 = vmatprep.subr.mxu0 0.0
    %1436 = vmatpush1.msra.mxu0 %v1318
    %1437 = vmatprep.subr.mxu0 0.0
    %1438 = vmatpush1.msra.mxu0 %v1317
    %1439 = vmatprep.subr.mxu0 0.0
    %1440 = vmatpush1.msra.mxu0 %v1316
    %1441 = vmatprep.subr.mxu0 0.0
    %1442 = vmatpush1.msra.mxu0 %v1315
    %1443 = vmatprep.subr.mxu0 0.0
    %1444 = vmatpush1.msra.mxu0 %v1314
    %1445 = vmatprep.subr.mxu0 0.0
    %1446 = vmatpush1.msra.mxu0 %v1313
    %1447 = vmatprep.subr.mxu0 0.0
    %1448 = vmatpush1.msra.mxu0 %v1312
    %1449 = vmatprep.subr.mxu0 0.0
    %1450 = vmatpush1.msra.mxu0 %v1311
    %1451 = vmatprep.subr.mxu0 0.0
    %1452 = vmatpush2.msra.mxu0 0.0
    %1453 = vmatprep.subr.mxu0 0.0
    %1454 = vmatpush2.msra.mxu0 0.0
    %1455 = vmatprep.subr.mxu0 0.0
    %1456 = vmatpush2.msra.mxu0 0.0
    %1457 = vmatprep.subr.mxu0 0.0
    %1458 = vmatpush2.msra.mxu0 0.0
    %1459 = vmatprep.subr.mxu0 0.0
    %1460 = vmatpush2.msra.mxu0 0.0
    %1461 = vmatprep.subr.mxu0 0.0
    %1462 = vmatpush2.msra.mxu0 0.0
    %1463 = vmatprep.subr.mxu0 0.0
    %1464 = vmatpush2.msra.mxu0 0.0
    %1465 = vmatprep.subr.mxu0 0.0
    %1466 = vmatpush2.msra.mxu0 0.0
    %1467 = vmatprep.subr.mxu0 0.0
    %1468 = vmatpush2.msra.mxu0 0.0
    %1469 = vmatprep.subr.mxu0 0.0
    %1470 = vmatpush2.msra.mxu0 0.0
    %1471 = vmatprep.subr.mxu0 0.0
    %1472 = vmatpush2.msra.mxu0 0.0
    %1473 = vmatprep.subr.mxu0 0.0
    %1474 = vmatpush2.msra.mxu0 0.0
    %1475 = vmatprep.subr.mxu0 0.0
    %1476 = vmatpush2.msra.mxu0 0.0
    %1477 = vmatprep.subr.mxu0 0.0
    %1478 = vmatpush2.msra.mxu0 0.0
    %1479 = vmatprep.subr.mxu0 0.0
    %1480 = vmatpush2.msra.mxu0 0.0
    %1481 = vmatprep.subr.mxu0 0.0
    %1482 = vmatpush2.msra.mxu0 0.0
    %1483 = vmatprep.mubr.f32.mxu0 0.0
    %1484 = vmatmul.mubr.f32.gmra.mxu0 %v1185
    %v1485 = vpop.f32.mrf.mxu0
    %v1486 = vadd.f32 %v1411, %v1485
    %v1487 = vpop.f32.mrf.mxu0
    %1488 = vmatprep.mubr.f32.mxu0 0.0
    %1489 = vmatmul.mubr.f32.gmra.mxu0 %v1190
    %v1490 = vpop.f32.mrf.mxu0
    %v1491 = vadd.f32 %v1416, %v1490
    %v1492 = vpop.f32.mrf.mxu0
    %1493 = vdwg.mxu0
    %s1494 = scalar_lea.vmem [#allocation4], 1536
    %v1495 = vld [vmem:[%s1494] sm:$0xff]
    %v1496 = vld [vmem:[%s1494 + $0x8] sm:$0xff]
    %v1497 = vld [vmem:[%s1494 + $0x10] sm:$0xff]
    %v1498 = vld [vmem:[%s1494 + $0x18] sm:$0xff]
    %v1499 = vld [vmem:[%s1494 + $0x20] sm:$0xff]
    %v1500 = vld [vmem:[%s1494 + $0x28] sm:$0xff]
    %v1501 = vld [vmem:[%s1494 + $0x30] sm:$0xff]
    %v1502 = vld [vmem:[%s1494 + $0x38] sm:$0xff]
    %v1503 = vld [vmem:[%s1494 + $0x40] sm:$0xff]
    %v1504 = vld [vmem:[%s1494 + $0x48] sm:$0xff]
    %v1505 = vld [vmem:[%s1494 + $0x50] sm:$0xff]
    %v1506 = vld [vmem:[%s1494 + $0x58] sm:$0xff]
    %v1507 = vld [vmem:[%s1494 + $0x60] sm:$0xff]
    %v1508 = vld [vmem:[%s1494 + $0x68] sm:$0xff]
    %v1509 = vld [vmem:[%s1494 + $0x70] sm:$0xff]
    %v1510 = vld [vmem:[%s1494 + $0x78] sm:$0xff]
    %1511 = vmatprep.subr.mxu0 0.0
    %1512 = vmatpush1.msra.mxu0 %v1510
    %1513 = vmatprep.subr.mxu0 0.0
    %1514 = vmatpush1.msra.mxu0 %v1509
    %1515 = vmatprep.subr.mxu0 0.0
    %1516 = vmatpush1.msra.mxu0 %v1508
    %1517 = vmatprep.subr.mxu0 0.0
    %1518 = vmatpush1.msra.mxu0 %v1507
    %1519 = vmatprep.subr.mxu0 0.0
    %1520 = vmatpush1.msra.mxu0 %v1506
    %1521 = vmatprep.subr.mxu0 0.0
    %1522 = vmatpush1.msra.mxu0 %v1505
    %1523 = vmatprep.subr.mxu0 0.0
    %1524 = vmatpush1.msra.mxu0 %v1504
    %1525 = vmatprep.subr.mxu0 0.0
    %1526 = vmatpush1.msra.mxu0 %v1503
    %1527 = vmatprep.subr.mxu0 0.0
    %1528 = vmatpush1.msra.mxu0 %v1502
    %1529 = vmatprep.subr.mxu0 0.0
    %1530 = vmatpush1.msra.mxu0 %v1501
    %1531 = vmatprep.subr.mxu0 0.0
    %1532 = vmatpush1.msra.mxu0 %v1500
    %1533 = vmatprep.subr.mxu0 0.0
    %1534 = vmatpush1.msra.mxu0 %v1499
    %1535 = vmatprep.subr.mxu0 0.0
    %1536 = vmatpush1.msra.mxu0 %v1498
    %1537 = vmatprep.subr.mxu0 0.0
    %1538 = vmatpush1.msra.mxu0 %v1497
    %1539 = vmatprep.subr.mxu0 0.0
    %1540 = vmatpush1.msra.mxu0 %v1496
    %1541 = vmatprep.subr.mxu0 0.0
    %1542 = vmatpush1.msra.mxu0 %v1495
    %1543 = vmatprep.subr.mxu0 0.0
    %1544 = vmatpush2.msra.mxu0 0.0
    %1545 = vmatprep.subr.mxu0 0.0
    %1546 = vmatpush2.msra.mxu0 0.0
    %1547 = vmatprep.subr.mxu0 0.0
    %1548 = vmatpush2.msra.mxu0 0.0
    %1549 = vmatprep.subr.mxu0 0.0
    %1550 = vmatpush2.msra.mxu0 0.0
    %1551 = vmatprep.subr.mxu0 0.0
    %1552 = vmatpush2.msra.mxu0 0.0
    %1553 = vmatprep.subr.mxu0 0.0
    %1554 = vmatpush2.msra.mxu0 0.0
    %1555 = vmatprep.subr.mxu0 0.0
    %1556 = vmatpush2.msra.mxu0 0.0
    %1557 = vmatprep.subr.mxu0 0.0
    %1558 = vmatpush2.msra.mxu0 0.0
    %1559 = vmatprep.subr.mxu0 0.0
    %1560 = vmatpush2.msra.mxu0 0.0
    %1561 = vmatprep.subr.mxu0 0.0
    %1562 = vmatpush2.msra.mxu0 0.0
    %1563 = vmatprep.subr.mxu0 0.0
    %1564 = vmatpush2.msra.mxu0 0.0
    %1565 = vmatprep.subr.mxu0 0.0
    %1566 = vmatpush2.msra.mxu0 0.0
    %1567 = vmatprep.subr.mxu0 0.0
    %1568 = vmatpush2.msra.mxu0 0.0
    %1569 = vmatprep.subr.mxu0 0.0
    %1570 = vmatpush2.msra.mxu0 0.0
    %1571 = vmatprep.subr.mxu0 0.0
    %1572 = vmatpush2.msra.mxu0 0.0
    %1573 = vmatprep.subr.mxu0 0.0
    %1574 = vmatpush2.msra.mxu0 0.0
    %1575 = vmatprep.mubr.f32.mxu0 0.0
    %1576 = vmatmul.mubr.f32.gmra.mxu0 %v1205
    %v1577 = vpop.f32.mrf.mxu0
    %v1578 = vadd.f32 0.0, %v1577
    %v1579 = vpop.f32.mrf.mxu0
    %1580 = vmatprep.mubr.f32.mxu0 0.0
    %1581 = vmatmul.mubr.f32.gmra.mxu0 %v1210
    %v1582 = vpop.f32.mrf.mxu0
    %v1583 = vadd.f32 0.0, %v1582
    %v1584 = vpop.f32.mrf.mxu0
    %1585 = vdwg.mxu0
    %v1586 = vadd.f32 %v1486, %v1578
    %v1587 = vadd.f32 %v1491, %v1583
    %v1588 = vld [vmem:[%s2 + $0x34] sm:$0x1]
    %v1589 = vlaneseq
    %v1590 = vshrl.u32 %v1589, 7
    %v1591 = vsub.s32 0, %v1590
    %v1592 = vrot.slane %v1588, %v1591
    %v1593 = vadd.f32 %v1586, %v1592
    %v1594 = vadd.f32 %v1587, %v1592
    %v1595 = vmax.f32 %v1593, 0.0
    %v1596 = vmax.f32 %v1594, 0.0
    %1597 = vst [vmem:[#allocation3 + $0x1] sm:$0xff] %v1595
    %1598 = vst [vmem:[#allocation3 + $0x11] sm:$0xff] %v1596
    %v1599 = vld [vmem:[#allocation3] sm:$0xff]
    %v1600 = vld [vmem:[#allocation3 + $0x10] sm:$0xff]
    %s1601 = scalar_lea.vmem [#allocation4], 1664
    %v1602 = vld [vmem:[%s1601] sm:$0xff]
    %v1603 = vld [vmem:[%s1601 + $0x8] sm:$0xff]
    %v1604 = vld [vmem:[%s1601 + $0x10] sm:$0xff]
    %v1605 = vld [vmem:[%s1601 + $0x18] sm:$0xff]
    %v1606 = vld [vmem:[%s1601 + $0x20] sm:$0xff]
    %v1607 = vld [vmem:[%s1601 + $0x28] sm:$0xff]
    %v1608 = vld [vmem:[%s1601 + $0x30] sm:$0xff]
    %v1609 = vld [vmem:[%s1601 + $0x38] sm:$0xff]
    %v1610 = vld [vmem:[%s1601 + $0x40] sm:$0xff]
    %v1611 = vld [vmem:[%s1601 + $0x48] sm:$0xff]
    %v1612 = vld [vmem:[%s1601 + $0x50] sm:$0xff]
    %v1613 = vld [vmem:[%s1601 + $0x58] sm:$0xff]
    %v1614 = vld [vmem:[%s1601 + $0x60] sm:$0xff]
    %v1615 = vld [vmem:[%s1601 + $0x68] sm:$0xff]
    %v1616 = vld [vmem:[%s1601 + $0x70] sm:$0xff]
    %v1617 = vld [vmem:[%s1601 + $0x78] sm:$0xff]
    %v1618 = vld [vmem:[#allocation3 + $0x1] sm:$0xff]
    %v1619 = vld [vmem:[#allocation3 + $0x11] sm:$0xff]
    %s1620 = scalar_lea.vmem [#allocation4], 1792
    %v1621 = vld [vmem:[%s1620] sm:$0xff]
    %v1622 = vld [vmem:[%s1620 + $0x8] sm:$0xff]
    %v1623 = vld [vmem:[%s1620 + $0x10] sm:$0xff]
    %v1624 = vld [vmem:[%s1620 + $0x18] sm:$0xff]
    %v1625 = vld [vmem:[%s1620 + $0x20] sm:$0xff]
    %v1626 = vld [vmem:[%s1620 + $0x28] sm:$0xff]
    %v1627 = vld [vmem:[%s1620 + $0x30] sm:$0xff]
    %v1628 = vld [vmem:[%s1620 + $0x38] sm:$0xff]
    %v1629 = vld [vmem:[%s1620 + $0x40] sm:$0xff]
    %v1630 = vld [vmem:[%s1620 + $0x48] sm:$0xff]
    %v1631 = vld [vmem:[%s1620 + $0x50] sm:$0xff]
    %v1632 = vld [vmem:[%s1620 + $0x58] sm:$0xff]
    %v1633 = vld [vmem:[%s1620 + $0x60] sm:$0xff]
    %v1634 = vld [vmem:[%s1620 + $0x68] sm:$0xff]
    %v1635 = vld [vmem:[%s1620 + $0x70] sm:$0xff]
    %v1636 = vld [vmem:[%s1620 + $0x78] sm:$0xff]
    %1637 = vmatprep.subr.mxu0 0.0
    %1638 = vmatpush1.msra.mxu0 %v1636
    %1639 = vmatprep.subr.mxu0 0.0
    %1640 = vmatpush1.msra.mxu0 %v1635
    %1641 = vmatprep.subr.mxu0 0.0
    %1642 = vmatpush1.msra.mxu0 %v1634
    %1643 = vmatprep.subr.mxu0 0.0
    %1644 = vmatpush1.msra.mxu0 %v1633
    %1645 = vmatprep.subr.mxu0 0.0
    %1646 = vmatpush1.msra.mxu0 %v1632
    %1647 = vmatprep.subr.mxu0 0.0
    %1648 = vmatpush1.msra.mxu0 %v1631
    %1649 = vmatprep.subr.mxu0 0.0
    %1650 = vmatpush1.msra.mxu0 %v1630
    %1651 = vmatprep.subr.mxu0 0.0
    %1652 = vmatpush1.msra.mxu0 %v1629
    %1653 = vmatprep.subr.mxu0 0.0
    %1654 = vmatpush1.msra.mxu0 %v1628
    %1655 = vmatprep.subr.mxu0 0.0
    %1656 = vmatpush1.msra.mxu0 %v1627
    %1657 = vmatprep.subr.mxu0 0.0
    %1658 = vmatpush1.msra.mxu0 %v1626
    %1659 = vmatprep.subr.mxu0 0.0
    %1660 = vmatpush1.msra.mxu0 %v1625
    %1661 = vmatprep.subr.mxu0 0.0
    %1662 = vmatpush1.msra.mxu0 %v1624
    %1663 = vmatprep.subr.mxu0 0.0
    %1664 = vmatpush1.msra.mxu0 %v1623
    %1665 = vmatprep.subr.mxu0 0.0
    %1666 = vmatpush1.msra.mxu0 %v1622
    %1667 = vmatprep.subr.mxu0 0.0
    %1668 = vmatpush1.msra.mxu0 %v1621
    %1669 = vmatprep.subr.mxu0 0.0
    %1670 = vmatpush2.msra.mxu0 0.0
    %1671 = vmatprep.subr.mxu0 0.0
    %1672 = vmatpush2.msra.mxu0 0.0
    %1673 = vmatprep.subr.mxu0 0.0
    %1674 = vmatpush2.msra.mxu0 0.0
    %1675 = vmatprep.subr.mxu0 0.0
    %1676 = vmatpush2.msra.mxu0 0.0
    %1677 = vmatprep.subr.mxu0 0.0
    %1678 = vmatpush2.msra.mxu0 0.0
    %1679 = vmatprep.subr.mxu0 0.0
    %1680 = vmatpush2.msra.mxu0 0.0
    %1681 = vmatprep.subr.mxu0 0.0
    %1682 = vmatpush2.msra.mxu0 0.0
    %1683 = vmatprep.subr.mxu0 0.0
    %1684 = vmatpush2.msra.mxu0 0.0
    %1685 = vmatprep.subr.mxu0 0.0
    %1686 = vmatpush2.msra.mxu0 0.0
    %1687 = vmatprep.subr.mxu0 0.0
    %1688 = vmatpush2.msra.mxu0 0.0
    %1689 = vmatprep.subr.mxu0 0.0
    %1690 = vmatpush2.msra.mxu0 0.0
    %1691 = vmatprep.subr.mxu0 0.0
    %1692 = vmatpush2.msra.mxu0 0.0
    %1693 = vmatprep.subr.mxu0 0.0
    %1694 = vmatpush2.msra.mxu0 0.0
    %1695 = vmatprep.subr.mxu0 0.0
    %1696 = vmatpush2.msra.mxu0 0.0
    %1697 = vmatprep.subr.mxu0 0.0
    %1698 = vmatpush2.msra.mxu0 0.0
    %1699 = vmatprep.subr.mxu0 0.0
    %1700 = vmatpush2.msra.mxu0 0.0
    %1701 = vmatprep.mubr.f32.mxu0 0.0
    %1702 = vmatmul.mubr.f32.gmra.mxu0 %v1618
    %v1703 = vpop.f32.mrf.mxu0
    %v1704 = vadd.f32 0.0, %v1703
    %v1705 = vpop.f32.mrf.mxu0
    %1706 = vmatprep.mubr.f32.mxu0 0.0
    %1707 = vmatmul.mubr.f32.gmra.mxu0 %v1619
    %v1708 = vpop.f32.mrf.mxu0
    %v1709 = vadd.f32 0.0, %v1708
    %v1710 = vpop.f32.mrf.mxu0
    %1711 = vdwg.mxu0
    %1712 = vmatprep.subr.mxu0 0.0
    %1713 = vmatpush1.msra.mxu0 %v1617
    %1714 = vmatprep.subr.mxu0 0.0
    %1715 = vmatpush1.msra.mxu0 %v1616
    %1716 = vmatprep.subr.mxu0 0.0
    %1717 = vmatpush1.msra.mxu0 %v1615
    %1718 = vmatprep.subr.mxu0 0.0
    %1719 = vmatpush1.msra.mxu0 %v1614
    %1720 = vmatprep.subr.mxu0 0.0
    %1721 = vmatpush1.msra.mxu0 %v1613
    %1722 = vmatprep.subr.mxu0 0.0
    %1723 = vmatpush1.msra.mxu0 %v1612
    %1724 = vmatprep.subr.mxu0 0.0
    %1725 = vmatpush1.msra.mxu0 %v1611
    %1726 = vmatprep.subr.mxu0 0.0
    %1727 = vmatpush1.msra.mxu0 %v1610
    %1728 = vmatprep.subr.mxu0 0.0
    %1729 = vmatpush1.msra.mxu0 %v1609
    %1730 = vmatprep.subr.mxu0 0.0
    %1731 = vmatpush1.msra.mxu0 %v1608
    %1732 = vmatprep.subr.mxu0 0.0
    %1733 = vmatpush1.msra.mxu0 %v1607
    %1734 = vmatprep.subr.mxu0 0.0
    %1735 = vmatpush1.msra.mxu0 %v1606
    %1736 = vmatprep.subr.mxu0 0.0
    %1737 = vmatpush1.msra.mxu0 %v1605
    %1738 = vmatprep.subr.mxu0 0.0
    %1739 = vmatpush1.msra.mxu0 %v1604
    %1740 = vmatprep.subr.mxu0 0.0
    %1741 = vmatpush1.msra.mxu0 %v1603
    %1742 = vmatprep.subr.mxu0 0.0
    %1743 = vmatpush1.msra.mxu0 %v1602
    %1744 = vmatprep.subr.mxu0 0.0
    %1745 = vmatpush2.msra.mxu0 0.0
    %1746 = vmatprep.subr.mxu0 0.0
    %1747 = vmatpush2.msra.mxu0 0.0
    %1748 = vmatprep.subr.mxu0 0.0
    %1749 = vmatpush2.msra.mxu0 0.0
    %1750 = vmatprep.subr.mxu0 0.0
    %1751 = vmatpush2.msra.mxu0 0.0
    %1752 = vmatprep.subr.mxu0 0.0
    %1753 = vmatpush2.msra.mxu0 0.0
    %1754 = vmatprep.subr.mxu0 0.0
    %1755 = vmatpush2.msra.mxu0 0.0
    %1756 = vmatprep.subr.mxu0 0.0
    %1757 = vmatpush2.msra.mxu0 0.0
    %1758 = vmatprep.subr.mxu0 0.0
    %1759 = vmatpush2.msra.mxu0 0.0
    %1760 = vmatprep.subr.mxu0 0.0
    %1761 = vmatpush2.msra.mxu0 0.0
    %1762 = vmatprep.subr.mxu0 0.0
    %1763 = vmatpush2.msra.mxu0 0.0
    %1764 = vmatprep.subr.mxu0 0.0
    %1765 = vmatpush2.msra.mxu0 0.0
    %1766 = vmatprep.subr.mxu0 0.0
    %1767 = vmatpush2.msra.mxu0 0.0
    %1768 = vmatprep.subr.mxu0 0.0
    %1769 = vmatpush2.msra.mxu0 0.0
    %1770 = vmatprep.subr.mxu0 0.0
    %1771 = vmatpush2.msra.mxu0 0.0
    %1772 = vmatprep.subr.mxu0 0.0
    %1773 = vmatpush2.msra.mxu0 0.0
    %1774 = vmatprep.subr.mxu0 0.0
    %1775 = vmatpush2.msra.mxu0 0.0
    %1776 = vmatprep.mubr.f32.mxu0 0.0
    %1777 = vmatmul.mubr.f32.gmra.mxu0 %v1599
    %v1778 = vpop.f32.mrf.mxu0
    %v1779 = vadd.f32 %v1704, %v1778
    %v1780 = vpop.f32.mrf.mxu0
    %1781 = vmatprep.mubr.f32.mxu0 0.0
    %1782 = vmatmul.mubr.f32.gmra.mxu0 %v1600
    %v1783 = vpop.f32.mrf.mxu0
    %v1784 = vadd.f32 %v1709, %v1783
    %v1785 = vpop.f32.mrf.mxu0
    %1786 = vdwg.mxu0
    %v1787 = vld [vmem:[#allocation3 + $0x2] sm:$0xff]
    %v1788 = vld [vmem:[#allocation3 + $0x12] sm:$0xff]
    %s1789 = scalar_lea.vmem [#allocation4], 1920
    %v1790 = vld [vmem:[%s1789] sm:$0xff]
    %v1791 = vld [vmem:[%s1789 + $0x8] sm:$0xff]
    %v1792 = vld [vmem:[%s1789 + $0x10] sm:$0xff]
    %v1793 = vld [vmem:[%s1789 + $0x18] sm:$0xff]
    %v1794 = vld [vmem:[%s1789 + $0x20] sm:$0xff]
    %v1795 = vld [vmem:[%s1789 + $0x28] sm:$0xff]
    %v1796 = vld [vmem:[%s1789 + $0x30] sm:$0xff]
    %v1797 = vld [vmem:[%s1789 + $0x38] sm:$0xff]
    %v1798 = vld [vmem:[%s1789 + $0x40] sm:$0xff]
    %v1799 = vld [vmem:[%s1789 + $0x48] sm:$0xff]
    %v1800 = vld [vmem:[%s1789 + $0x50] sm:$0xff]
    %v1801 = vld [vmem:[%s1789 + $0x58] sm:$0xff]
    %v1802 = vld [vmem:[%s1789 + $0x60] sm:$0xff]
    %v1803 = vld [vmem:[%s1789 + $0x68] sm:$0xff]
    %v1804 = vld [vmem:[%s1789 + $0x70] sm:$0xff]
    %v1805 = vld [vmem:[%s1789 + $0x78] sm:$0xff]
    %1806 = vmatprep.subr.mxu0 0.0
    %1807 = vmatpush1.msra.mxu0 %v1805
    %1808 = vmatprep.subr.mxu0 0.0
    %1809 = vmatpush1.msra.mxu0 %v1804
    %1810 = vmatprep.subr.mxu0 0.0
    %1811 = vmatpush1.msra.mxu0 %v1803
    %1812 = vmatprep.subr.mxu0 0.0
    %1813 = vmatpush1.msra.mxu0 %v1802
    %1814 = vmatprep.subr.mxu0 0.0
    %1815 = vmatpush1.msra.mxu0 %v1801
    %1816 = vmatprep.subr.mxu0 0.0
    %1817 = vmatpush1.msra.mxu0 %v1800
    %1818 = vmatprep.subr.mxu0 0.0
    %1819 = vmatpush1.msra.mxu0 %v1799
    %1820 = vmatprep.subr.mxu0 0.0
    %1821 = vmatpush1.msra.mxu0 %v1798
    %1822 = vmatprep.subr.mxu0 0.0
    %1823 = vmatpush1.msra.mxu0 %v1797
    %1824 = vmatprep.subr.mxu0 0.0
    %1825 = vmatpush1.msra.mxu0 %v1796
    %1826 = vmatprep.subr.mxu0 0.0
    %1827 = vmatpush1.msra.mxu0 %v1795
    %1828 = vmatprep.subr.mxu0 0.0
    %1829 = vmatpush1.msra.mxu0 %v1794
    %1830 = vmatprep.subr.mxu0 0.0
    %1831 = vmatpush1.msra.mxu0 %v1793
    %1832 = vmatprep.subr.mxu0 0.0
    %1833 = vmatpush1.msra.mxu0 %v1792
    %1834 = vmatprep.subr.mxu0 0.0
    %1835 = vmatpush1.msra.mxu0 %v1791
    %1836 = vmatprep.subr.mxu0 0.0
    %1837 = vmatpush1.msra.mxu0 %v1790
    %1838 = vmatprep.subr.mxu0 0.0
    %1839 = vmatpush2.msra.mxu0 0.0
    %1840 = vmatprep.subr.mxu0 0.0
    %1841 = vmatpush2.msra.mxu0 0.0
    %1842 = vmatprep.subr.mxu0 0.0
    %1843 = vmatpush2.msra.mxu0 0.0
    %1844 = vmatprep.subr.mxu0 0.0
    %1845 = vmatpush2.msra.mxu0 0.0
    %1846 = vmatprep.subr.mxu0 0.0
    %1847 = vmatpush2.msra.mxu0 0.0
    %1848 = vmatprep.subr.mxu0 0.0
    %1849 = vmatpush2.msra.mxu0 0.0
    %1850 = vmatprep.subr.mxu0 0.0
    %1851 = vmatpush2.msra.mxu0 0.0
    %1852 = vmatprep.subr.mxu0 0.0
    %1853 = vmatpush2.msra.mxu0 0.0
    %1854 = vmatprep.subr.mxu0 0.0
    %1855 = vmatpush2.msra.mxu0 0.0
    %1856 = vmatprep.subr.mxu0 0.0
    %1857 = vmatpush2.msra.mxu0 0.0
    %1858 = vmatprep.subr.mxu0 0.0
    %1859 = vmatpush2.msra.mxu0 0.0
    %1860 = vmatprep.subr.mxu0 0.0
    %1861 = vmatpush2.msra.mxu0 0.0
    %1862 = vmatprep.subr.mxu0 0.0
    %1863 = vmatpush2.msra.mxu0 0.0
    %1864 = vmatprep.subr.mxu0 0.0
    %1865 = vmatpush2.msra.mxu0 0.0
    %1866 = vmatprep.subr.mxu0 0.0
    %1867 = vmatpush2.msra.mxu0 0.0
    %1868 = vmatprep.subr.mxu0 0.0
    %1869 = vmatpush2.msra.mxu0 0.0
    %1870 = vmatprep.mubr.f32.mxu0 0.0
    %1871 = vmatmul.mubr.f32.gmra.mxu0 %v1787
    %v1872 = vpop.f32.mrf.mxu0
    %v1873 = vadd.f32 0.0, %v1872
    %v1874 = vpop.f32.mrf.mxu0
    %1875 = vmatprep.mubr.f32.mxu0 0.0
    %1876 = vmatmul.mubr.f32.gmra.mxu0 %v1788
    %v1877 = vpop.f32.mrf.mxu0
    %v1878 = vadd.f32 0.0, %v1877
    %v1879 = vpop.f32.mrf.mxu0
    %1880 = vdwg.mxu0
    %v1881 = vadd.f32 %v1779, %v1873
    %v1882 = vadd.f32 %v1784, %v1878
    %v1883 = vld [vmem:[%s2 + $0x35] sm:$0x1]
    %v1884 = vlaneseq
    %v1885 = vshrl.u32 %v1884, 7
    %v1886 = vsub.s32 0, %v1885
    %v1887 = vrot.slane %v1883, %v1886
    %v1888 = vadd.f32 %v1881, %v1887
    %v1889 = vadd.f32 %v1882, %v1887
    %v1890 = vadd.f32 %v1888, %v1302
    %v1891 = vadd.f32 %v1889, %v1307
    %v1892 = vmax.f32 %v1890, 0.0
    %v1893 = vmax.f32 %v1891, 0.0
    %1894 = vst [vmem:[%s3] sm:$0xff] %v1892
    %1895 = vst [vmem:[%s3 + $0x8] sm:$0xff] %v1893
    // Predicated region
    $region18: #{resnet_forward.1} parent=1 // pred_check
      _
    $region19: #{resnet_forward.1} parent=1 // pred_check_branch
      %1897 = sbr.rel (0) target = $region21
    $region20: #{resnet_forward.1} parent=1 // pred_region
      _
    $region21: #{resnet_forward.1} parent=1 // pred_fallthru
      _
    // Predicated region
    $region22: #{resnet_forward.1} parent=1 // pred_check
      _
    $region23: #{resnet_forward.1} parent=1 // pred_check_branch
      %1899 = sbr.rel (0) target = $region25
    $region24: #{resnet_forward.1} parent=1 // pred_region
      _
    $region25: #{resnet_forward.1} parent=1 // pred_fallthru
      _
    %1900 = vsyncpa [#allocation5], 1

</llo_original>
